<compile_context>
chip_gen: v6e
topology: v6e:2x2x1
jax: 0.10.0
libtpu: 0.0.40
codegen_flags: <defaults>
</compile_context>

<pallas_src>
import functools
import math

import jax
import jax.numpy as jnp
from jax.experimental import pallas as pl
from jax.experimental.pallas import tpu as pltpu


def _round_up(a, b):
    return (a + b - 1) // b * b


def _proj_kernel(x_ref, wq_ref, wk_ref, wv_ref, q_ref, k_ref, v_ref):
    """One tile of rows -> packed (head-concatenated) Q/K/V projections."""
    x = x_ref[...]                                            # (ts, E) bf16
    q_ref[...] = jnp.dot(x, wq_ref[...],
                         preferred_element_type=jnp.float32).astype(jnp.bfloat16)
    k_ref[...] = jnp.dot(x, wk_ref[...],
                         preferred_element_type=jnp.float32).astype(jnp.bfloat16)
    v_ref[...] = jnp.dot(x, wv_ref[...],
                         preferred_element_type=jnp.float32).astype(jnp.bfloat16)


def _attn_kernel(q_ref, k_ref, v_ref, w0_ref, z_ref, m_ref, l_ref, acc_ref, *,
                 num_heads, head_dim, seq_len, block_k):
    """Flash-style attention: grid = (q tiles, k tiles); online softmax per head."""
    H, D = num_heads, head_dim
    kv = pl.program_id(1)

    @pl.when(kv == 0)
    def _():
        m_ref[...] = jnp.full_like(m_ref, -jnp.inf)
        l_ref[...] = jnp.zeros_like(l_ref)
        acc_ref[...] = jnp.zeros_like(acc_ref)

    q = q_ref[...]                                            # (tq, H*D) bf16, pre-scaled
    k = k_ref[...]                                            # (tk, H*D) bf16
    v = v_ref[...]                                            # (tk, H*D) bf16

    # Mask K rows that are sequence padding (only emitted when padding exists).
    need_mask = (seq_len % block_k) != 0
    if need_mask:
        col = kv * block_k + jax.lax.broadcasted_iota(
            jnp.int32, (q.shape[0], block_k), 1)
        kmask = col < seq_len

    # TODO(synk): for very large tiles switch to lax.fori_loop(unroll=2) with
    # pl.ds(h*D, D) slices so per-head live ranges stay bounded (vreg pressure).
    # TODO(synk): odd heads slice lanes at offset 64 inside a 128-lane vreg;
    # lane-aligned per-head scratch would remove the resulting XLU shuffles.
    for h in range(H):
        lo = h * D
        qh = q[:, lo:lo + D]
        kh = k[:, lo:lo + D]
        vh = v[:, lo:lo + D]
        # Contract on the last axis of both operands (no explicit K transpose).
        s = jax.lax.dot_general(qh, kh, (((1,), (1,)), ((), ())),
                                preferred_element_type=jnp.float32)    # (tq, tk)
        if need_mask:
            s = jnp.where(kmask, s, -jnp.inf)
        m_prev = m_ref[:, h:h + 1]                            # (tq, 1)
        m_new = jnp.maximum(m_prev, jnp.max(s, axis=-1, keepdims=True))
        alpha = jnp.exp(m_prev - m_new)
        p = jnp.exp(s - m_new)
        l_ref[:, h:h + 1] = alpha * l_ref[:, h:h + 1] + jnp.sum(
            p, axis=-1, keepdims=True)
        acc_ref[:, lo:lo + D] = alpha * acc_ref[:, lo:lo + D] + jnp.dot(
            p.astype(jnp.bfloat16), vh, preferred_element_type=jnp.float32)
        m_ref[:, h:h + 1] = m_new

    @pl.when(kv == pl.num_programs(1) - 1)
    def _():
        # Normalize each head's accumulator, then ONE fused output projection
        # (K = H*D = 512, full MXU depth) instead of H separate K=D matmuls.
        for h in range(H):
            lo = h * D
            inv_l = pl.reciprocal(l_ref[:, h:h + 1], approx=True)
            acc_ref[:, lo:lo + D] = acc_ref[:, lo:lo + D] * inv_l
        z_ref[...] = jnp.dot(acc_ref[...].astype(jnp.bfloat16), w0_ref[...],
                             preferred_element_type=jnp.float32)
        # TODO(synk): D=64 (<128 lanes) forces masked vst on the output write; a
        # lane-dense output slab would remove that if it ever becomes visible.


def multi_head_attention(x, w_q, w_k, w_v, w_0, *, block=256):
    """x: (S, E); w_q/w_k/w_v: (H, E, D); w_0: (E, D) with E == H*D. -> (S, D)"""
    H, E, D = w_q.shape
    S = x.shape[0]
    assert x.shape == (S, E) and w_0.shape == (E, D) and E == H * D
    scale = 1.0 / math.sqrt(D)

    # Pack heads along the output dim: (H, E, D) -> (E, H*D); column h*D+d is
    # W[h, :, d], so q_packed[:, h*D:(h+1)*D] == q_h.  The 1/sqrt(D) softmax
    # scale is folded into W_q in f32 before the bf16 cast.
    def pack(w, s=1.0):
        return (jnp.transpose(w, (1, 0, 2)).reshape(E, H * D) * s).astype(jnp.bfloat16)

    wq_p = pack(w_q, scale)
    wk_p = pack(w_k)
    wv_p = pack(w_v)
    w0_b = w_0.astype(jnp.bfloat16)

    # Tile size: multiple of 8; pad S up to a multiple of it (never fall back
    # to one giant tile).  If everything would fit in a single query tile but
    # there is enough work, halve the tile so the query grid has >= 2 steps
    # (v7x has 2 TensorCores per chip).
    s8 = _round_up(S, 8)
    blk = min(_round_up(block, 8), s8)
    if s8 >= 16 and blk >= s8:
        blk = _round_up((s8 + 1) // 2, 8)
    S_pad = _round_up(S, blk)
    n_tiles = S_pad // blk

    x_b = x.astype(jnp.bfloat16)
    if S_pad != S:
        x_b = jnp.pad(x_b, ((0, S_pad - S), (0, 0)))

    single = pl.Buffered(buffer_count=1)   # grid-invariant inputs: no double-buffer

    # ---- Kernel A: packed Q/K/V projections, computed once over the rows ----
    proj_vmem = (2 * blk * E * 2              # x tile (double-buffered)
                 + 3 * E * H * D * 2          # weights (single-buffered)
                 + 3 * 2 * blk * H * D * 2)   # q/k/v out tiles (double-buffered)
    q, k, v = pl.pallas_call(
        _proj_kernel,
        out_shape=[jax.ShapeDtypeStruct((S_pad, H * D), jnp.bfloat16)] * 3,
        grid_spec=pltpu.PrefetchScalarGridSpec(
            num_scalar_prefetch=0,
            grid=(n_tiles,),
            in_specs=[
                pl.BlockSpec((blk, E), lambda i: (i, 0)),
                pl.BlockSpec((E, H * D), lambda i: (0, 0), pipeline_mode=single),
                pl.BlockSpec((E, H * D), lambda i: (0, 0), pipeline_mode=single),
                pl.BlockSpec((E, H * D), lambda i: (0, 0), pipeline_mode=single),
            ],
            out_specs=[pl.BlockSpec((blk, H * D), lambda i: (i, 0))] * 3,
        ),
        compiler_params=pltpu.CompilerParams(
            dimension_semantics=("parallel",),
            vmem_limit_bytes=int(min(max(2 * proj_vmem, 16 << 20), 48 << 20)),
        ),
    )(x_b, wq_p, wk_p, wv_p)

    # ---- Kernel B: flash attention over K tiles + fused output projection ----
    attn_vmem = (3 * 2 * blk * H * D * 2      # q/k/v tiles (double-buffered)
                 + E * D * 2                  # w0 (single-buffered)
                 + blk * H * D * 4            # acc scratch
                 + 2 * blk * 128 * 4          # m/l scratch (lane-padded)
                 + 2 * blk * D * 4)           # out tile (double-buffered)
    kernel = functools.partial(_attn_kernel, num_heads=H, head_dim=D,
                               seq_len=S, block_k=blk)
    z = pl.pallas_call(
        kernel,
        out_shape=jax.ShapeDtypeStruct((S_pad, D), jnp.float32),
        grid_spec=pltpu.PrefetchScalarGridSpec(
            num_scalar_prefetch=0,
            grid=(n_tiles, n_tiles),
            in_specs=[
                pl.BlockSpec((blk, H * D), lambda i, j: (i, 0)),
                pl.BlockSpec((blk, H * D), lambda i, j: (j, 0)),
                pl.BlockSpec((blk, H * D), lambda i, j: (j, 0)),
                pl.BlockSpec((E, D), lambda i, j: (0, 0), pipeline_mode=single),
            ],
            out_specs=pl.BlockSpec((blk, D), lambda i, j: (i, 0)),
            scratch_shapes=[
                pltpu.VMEM((blk, H), jnp.float32),        # running max per head
                pltpu.VMEM((blk, H), jnp.float32),        # running sum per head
                pltpu.VMEM((blk, H * D), jnp.float32),    # running PV accumulator
            ],
        ),
        compiler_params=pltpu.CompilerParams(
            dimension_semantics=("parallel", "arbitrary"),
            vmem_limit_bytes=int(min(max(2 * attn_vmem, 16 << 20), 48 << 20)),
        ),
    )(q, k, v, w0_b)

    return z[:S]


def _reference(x, w_q, w_k, w_v, w_0, scale):
    """Pure-JAX reference implementing the module's forward with the same
    precision policy as the kernel (bf16 MXU inputs, f32 accumulation)."""
    H, E, D = w_q.shape
    xb = x.astype(jnp.bfloat16)
    q = (jnp.einsum("se,hed->hsd", xb, w_q.astype(jnp.bfloat16),
                    preferred_element_type=jnp.float32) * scale).astype(jnp.bfloat16)
    k = jnp.einsum("se,hed->hsd", xb, w_k.astype(jnp.bfloat16),
                   preferred_element_type=jnp.float32).astype(jnp.bfloat16)
    v = jnp.einsum("se,hed->hsd", xb, w_v.astype(jnp.bfloat16),
                   preferred_element_type=jnp.float32).astype(jnp.bfloat16)
    s = jnp.einsum("hqd,hkd->hqk", q, k, preferred_element_type=jnp.float32)
    p = jax.nn.softmax(s, axis=-1)
    r2 = jnp.einsum("hqk,hkd->hqd", p.astype(jnp.bfloat16), v,
                    preferred_element_type=jnp.float32)
    cat = jnp.transpose(r2, (1, 0, 2)).reshape(x.shape[0], H * D)
    return jnp.dot(cat.astype(jnp.bfloat16), w_0.astype(jnp.bfloat16),
                   preferred_element_type=jnp.float32)


if __name__ == "__main__":
    # Module defaults: sentence_length=5, imbd_size=512, hidden=64, heads=8
    sentence_length = 5
    imbd_size = 512
    hidden_size = 64
    num_heads = 8

    key = jax.random.PRNGKey(0)
    kx, kq, kk, kv, k0 = jax.random.split(key, 5)
    # Centered, modest-magnitude activations keep the softmax well conditioned
    # (weights stay uniform [0,1) like torch.rand in the module).
    x = (jax.random.uniform(kx, (sentence_length, imbd_size),
                            dtype=jnp.float32) - 0.5) * 0.25
    w_q = jax.random.uniform(kq, (num_heads, imbd_size, hidden_size),
                             dtype=jnp.float32)
    w_k = jax.random.uniform(kk, (num_heads, imbd_size, hidden_size),
                             dtype=jnp.float32)
    w_v = jax.random.uniform(kv, (num_heads, imbd_size, hidden_size),
                             dtype=jnp.float32)
    w_0 = jax.random.uniform(k0, (imbd_size, hidden_size), dtype=jnp.float32)

    z = multi_head_attention(x, w_q, w_k, w_v, w_0)
    z = jax.block_until_ready(z)

    z_ref = _reference(x, w_q, w_k, w_v, w_0, 1.0 / math.sqrt(hidden_size))
    assert z.shape == (sentence_length, hidden_size)
    rel_err = float(jnp.max(jnp.abs(z - z_ref)) / jnp.max(jnp.abs(z_ref)))
    assert rel_err < 2e-2, f"mismatch vs reference: rel-max err {rel_err:.3e}"

    print("KERNEL_OK")
</pallas_src>

<mosaic_0001>
module attributes {stable_mosaic.version = 11 : i64} {
  func.func @_proj_kernel(%arg0: i32, %arg1: memref<8x512xbf16, #tpu.memory_space<vmem>>, %arg2: memref<512x512xbf16, #tpu.memory_space<vmem>>, %arg3: memref<512x512xbf16, #tpu.memory_space<vmem>>, %arg4: memref<512x512xbf16, #tpu.memory_space<vmem>>, %arg5: memref<8x512xbf16, #tpu.memory_space<vmem>>, %arg6: memref<8x512xbf16, #tpu.memory_space<vmem>>, %arg7: memref<8x512xbf16, #tpu.memory_space<vmem>>) attributes {dimension_semantics = [#tpu.dimension_semantics<parallel>], iteration_bounds = array<i64: 1>, scalar_prefetch = 0 : i64, scratch_operands = 0 : i64, tpu.core_type = #tpu.core_type<tc>, window_params = [{transform_indices = @transform_0, window_bounds = array<i64: 8, 512>}, {pipeline_mode = #tpu.pipeline_mode<synchronous>, transform_indices = @transform_1, window_bounds = array<i64: 512, 512>}, {pipeline_mode = #tpu.pipeline_mode<synchronous>, transform_indices = @transform_2, window_bounds = array<i64: 512, 512>}, {pipeline_mode = #tpu.pipeline_mode<synchronous>, transform_indices = @transform_3, window_bounds = array<i64: 512, 512>}, {transform_indices = @transform_4, window_bounds = array<i64: 8, 512>}, {transform_indices = @transform_5, window_bounds = array<i64: 8, 512>}, {transform_indices = @transform_6, window_bounds = array<i64: 8, 512>}]} {
    %c0 = arith.constant 0 : index
    %c0_0 = arith.constant 0 : index
    %0 = vector.load %arg1[%c0, %c0_0] : memref<8x512xbf16, #tpu.memory_space<vmem>>, vector<8x512xbf16>
    %c0_1 = arith.constant 0 : index
    %c0_2 = arith.constant 0 : index
    %1 = vector.load %arg2[%c0_1, %c0_2] : memref<512x512xbf16, #tpu.memory_space<vmem>>, vector<512x512xbf16>
    %cst = arith.constant dense<0.000000e+00> : vector<8x512xf32>
    %2 = tpu.matmul %0, %1, %cst {dimension_numbers = #tpu.dot_dimension_numbers<[1], [0], [0], [1], [0, 0, 1, 1], [], []>} : vector<8x512xbf16>, vector<512x512xbf16>, vector<8x512xf32> -> vector<8x512xf32>
    %3 = arith.truncf %2 : vector<8x512xf32> to vector<8x512xbf16>
    %c0_3 = arith.constant 0 : index
    %c0_4 = arith.constant 0 : index
    %4 = vector.load %arg5[%c0_3, %c0_4] : memref<8x512xbf16, #tpu.memory_space<vmem>>, vector<8x512xbf16>
    tpu.vector_store %arg5[%c0_3, %c0_4], %3 {strides = array<i32>} : memref<8x512xbf16, #tpu.memory_space<vmem>>, vector<8x512xbf16>,
    %c0_5 = arith.constant 0 : index
    %c0_6 = arith.constant 0 : index
    %5 = vector.load %arg3[%c0_5, %c0_6] : memref<512x512xbf16, #tpu.memory_space<vmem>>, vector<512x512xbf16>
    %cst_7 = arith.constant dense<0.000000e+00> : vector<8x512xf32>
    %6 = tpu.matmul %0, %5, %cst_7 {dimension_numbers = #tpu.dot_dimension_numbers<[1], [0], [0], [1], [0, 0, 1, 1], [], []>} : vector<8x512xbf16>, vector<512x512xbf16>, vector<8x512xf32> -> vector<8x512xf32>
    %7 = arith.truncf %6 : vector<8x512xf32> to vector<8x512xbf16>
    %c0_8 = arith.constant 0 : index
    %c0_9 = arith.constant 0 : index
    %8 = vector.load %arg6[%c0_8, %c0_9] : memref<8x512xbf16, #tpu.memory_space<vmem>>, vector<8x512xbf16>
    tpu.vector_store %arg6[%c0_8, %c0_9], %7 {strides = array<i32>} : memref<8x512xbf16, #tpu.memory_space<vmem>>, vector<8x512xbf16>,
    %c0_10 = arith.constant 0 : index
    %c0_11 = arith.constant 0 : index
    %9 = vector.load %arg4[%c0_10, %c0_11] : memref<512x512xbf16, #tpu.memory_space<vmem>>, vector<512x512xbf16>
    %cst_12 = arith.constant dense<0.000000e+00> : vector<8x512xf32>
    %10 = tpu.matmul %0, %9, %cst_12 {dimension_numbers = #tpu.dot_dimension_numbers<[1], [0], [0], [1], [0, 0, 1, 1], [], []>} : vector<8x512xbf16>, vector<512x512xbf16>, vector<8x512xf32> -> vector<8x512xf32>
    %11 = arith.truncf %10 : vector<8x512xf32> to vector<8x512xbf16>
    %c0_13 = arith.constant 0 : index
    %c0_14 = arith.constant 0 : index
    %12 = vector.load %arg7[%c0_13, %c0_14] : memref<8x512xbf16, #tpu.memory_space<vmem>>, vector<8x512xbf16>
    tpu.vector_store %arg7[%c0_13, %c0_14], %11 {strides = array<i32>} : memref<8x512xbf16, #tpu.memory_space<vmem>>, vector<8x512xbf16>,
    return
  }
  func.func @transform_0(%arg0: i32) -> (i32, i32) {
    %c0_i32 = arith.constant 0 : i32
    %c0_i32_0 = arith.constant 0 : i32
    return %arg0, %c0_i32 : i32, i32
  }
  func.func @transform_1(%arg0: i32) -> (i32, i32) {
    %c0_i32 = arith.constant 0 : i32
    %c0_i32_0 = arith.constant 0 : i32
    %c0_i32_1 = arith.constant 0 : i32
    return %c0_i32, %c0_i32_0 : i32, i32
  }
  func.func @transform_2(%arg0: i32) -> (i32, i32) {
    %c0_i32 = arith.constant 0 : i32
    %c0_i32_0 = arith.constant 0 : i32
    %c0_i32_1 = arith.constant 0 : i32
    return %c0_i32, %c0_i32_0 : i32, i32
  }
  func.func @transform_3(%arg0: i32) -> (i32, i32) {
    %c0_i32 = arith.constant 0 : i32
    %c0_i32_0 = arith.constant 0 : i32
    %c0_i32_1 = arith.constant 0 : i32
    return %c0_i32, %c0_i32_0 : i32, i32
  }
  func.func @transform_4(%arg0: i32) -> (i32, i32) {
    %c0_i32 = arith.constant 0 : i32
    %c0_i32_0 = arith.constant 0 : i32
    return %arg0, %c0_i32 : i32, i32
  }
  func.func @transform_5(%arg0: i32) -> (i32, i32) {
    %c0_i32 = arith.constant 0 : i32
    %c0_i32_0 = arith.constant 0 : i32
    return %arg0, %c0_i32 : i32, i32
  }
  func.func @transform_6(%arg0: i32) -> (i32, i32) {
    %c0_i32 = arith.constant 0 : i32
    %c0_i32_0 = arith.constant 0 : i32
    return %arg0, %c0_i32 : i32, i32
  }
}

</mosaic_0001>

<llo_original>
// kernel: tpu_custom_call.1
$region0: #{tpu_custom_call.1}
  #allocation0 [shape = 'u32[]', space=smem, size = 0x4, offset = 0x4, fixed_abs, tag = 'smem constant byte address 0x4 - core index']
  #allocation1 [shape = 'u32[144,128]{1,0:T(1,128)}', space=vmem, size = 0x12000, scoped, tag = 'internal scratch']
  %s0 = inlined_call_operand.hbm [shape: bf16[8,512], index: 0, kind: input, shape index: {}]
  %s1 = inlined_call_operand.hbm [shape: bf16[512,512], index: 1, kind: input, shape index: {}]
  %s2 = inlined_call_operand.hbm [shape: bf16[512,512], index: 2, kind: input, shape index: {}]
  %s3 = inlined_call_operand.hbm [shape: bf16[512,512], index: 3, kind: input, shape index: {}]
  %s4 = inlined_call_operand.hbm [shape: bf16[8,512], index: 4, kind: output, shape index: {0}]
  %s5 = inlined_call_operand.hbm [shape: bf16[8,512], index: 5, kind: output, shape index: {1}]
  %s6 = inlined_call_operand.hbm [shape: bf16[8,512], index: 6, kind: output, shape index: {2}]
  %7 = xla_tuple %s4, %s5, %s6
  %s8 = sld [smem:[#allocation0]]
  $region58: #{tpu_custom_call.1} parent=0
    _
  %s10 = ssub.s32 1, %s8
  %s11 = scalar_select 0, %s10, %s8
  $region1: #{tpu_custom_call.1} parent=0
    #allocation2 [shape = 'u8[8192]{0}', space=vmem, size = 0x2000, scoped, tag = 'input window, operand 0, single buffered']
    #allocation3 [shape = 's32[1]{0}', space=sflag, size = 0x4, scoped, tag = 'scoped memory for tpu_custom_call.1']
    #allocation4 [shape = 's32[1]{0}', space=sflag, size = 0x4, scoped, tag = 'scoped memory for tpu_custom_call.1']
    #allocation5 [shape = 'u8[524288]{0}', space=vmem, size = 0x80000, scoped, tag = 'input window, operand 1, single buffered']
    #allocation6 [shape = 's32[1]{0}', space=sflag, size = 0x4, scoped, tag = 'scoped memory for tpu_custom_call.1']
    #allocation7 [shape = 'u8[524288]{0}', space=vmem, size = 0x80000, scoped, tag = 'input window, operand 2, single buffered']
    #allocation8 [shape = 'u8[524288]{0}', space=vmem, size = 0x80000, scoped, tag = 'input window, operand 3, single buffered']
    #allocation9 [shape = 's32[1]{0}', space=sflag, size = 0x4, scoped, tag = 'scoped memory for tpu_custom_call.1']
    #allocation10 [shape = 'u8[8192]{0}', space=vmem, size = 0x2000, scoped, tag = 'output window, operand 0, single buffered']
    #allocation11 [shape = 'u8[8192]{0}', space=vmem, size = 0x2000, scoped, tag = 'output window, operand 1, single buffered']
    #allocation12 [shape = 's32[1]{0}', space=sflag, size = 0x4, scoped, tag = 'scoped memory for tpu_custom_call.1']
    #allocation13 [shape = 'u8[8192]{0}', space=vmem, size = 0x2000, scoped, tag = 'output window, operand 2, single buffered']
    %12 = vsyncpa [#allocation3], 0
    %13 = vsyncpa [#allocation6], 0
    %14 = vsyncpa [#allocation9], 0
    %15 = vsyncpa [#allocation4], 0
    %16 = vsyncpa [#allocation12], 0
    // Predicated region
    $region2: #{tpu_custom_call.1} parent=1 // pred_check
      _
    $region3: #{tpu_custom_call.1} parent=1 // pred_check_branch
      %18 = sbr.rel (0) target = $region5
    $region4: #{tpu_custom_call.1} parent=1 // pred_region
      %s20 = ssub.s32 256, 256
      %21 = vsyncadd [#allocation3], %s20
      %s23 = sshll.u32 [#allocation2], 4
      %s24 = int_to_ptr.vmem [resolvable:$true] %s23
      %26 = dma.hbm_to_vmem [thread:$0]  %s0, 256, %s24, [#allocation3]
    $region5: #{tpu_custom_call.1} parent=1 // pred_fallthru
      _
    // Predicated region
    $region6: #{tpu_custom_call.1} parent=1 // pred_check
      _
    $region7: #{tpu_custom_call.1} parent=1 // pred_check_branch
      %28 = sbr.rel (0) target = $region9
    $region8: #{tpu_custom_call.1} parent=1 // pred_region
      %s30 = ssub.s32 16384, 16384
      %31 = vsyncadd [#allocation6], %s30
      %s32 = sshll.u32 [#allocation5], 4
      %s33 = int_to_ptr.vmem [resolvable:$true] %s32
      %38 = dma.hbm_to_vmem [thread:$0]  %s1, 16384, %s33, [#allocation6], 256, 256, 16
    $region9: #{tpu_custom_call.1} parent=1 // pred_fallthru
      _
    // Predicated region
    $region10: #{tpu_custom_call.1} parent=1 // pred_check
      _
    $region11: #{tpu_custom_call.1} parent=1 // pred_check_branch
      %40 = sbr.rel (0) target = $region13
    $region12: #{tpu_custom_call.1} parent=1 // pred_region
      %s42 = ssub.s32 16384, 16384
      %43 = vsyncadd [#allocation6], %s42
      %s44 = sshll.u32 [#allocation7], 4
      %s45 = int_to_ptr.vmem [resolvable:$true] %s44
      %50 = dma.hbm_to_vmem [thread:$0]  %s2, 16384, %s45, [#allocation6], 256, 256, 16
    $region13: #{tpu_custom_call.1} parent=1 // pred_fallthru
      _
    // Predicated region
    $region14: #{tpu_custom_call.1} parent=1 // pred_check
      _
    $region15: #{tpu_custom_call.1} parent=1 // pred_check_branch
      %52 = sbr.rel (0) target = $region17
    $region16: #{tpu_custom_call.1} parent=1 // pred_region
      %s54 = ssub.s32 16384, 16384
      %55 = vsyncadd [#allocation9], %s54
      %s56 = sshll.u32 [#allocation8], 4
      %s57 = int_to_ptr.vmem [resolvable:$true] %s56
      %62 = dma.hbm_to_vmem [thread:$0]  %s3, 16384, %s57, [#allocation9], 256, 256, 16
    $region17: #{tpu_custom_call.1} parent=1 // pred_fallthru
      _
    // Predicated region
    $region18: #{tpu_custom_call.1} parent=1 // pred_check
      _
    $region19: #{tpu_custom_call.1} parent=1 // pred_check_branch
      %64 = sbr.rel (0) target = $region21
    $region20: #{tpu_custom_call.1} parent=1 // pred_region
      %65 = dma.done [#allocation3], 256
    $region21: #{tpu_custom_call.1} parent=1 // pred_fallthru
      _
    // Predicated region
    $region22: #{tpu_custom_call.1} parent=1 // pred_check
      _
    $region23: #{tpu_custom_call.1} parent=1 // pred_check_branch
      %67 = sbr.rel (0) target = $region25
    $region24: #{tpu_custom_call.1} parent=1 // pred_region
      %68 = dma.done [#allocation6], 16384
    $region25: #{tpu_custom_call.1} parent=1 // pred_fallthru
      _
    // Predicated region
    $region26: #{tpu_custom_call.1} parent=1 // pred_check
      _
    $region27: #{tpu_custom_call.1} parent=1 // pred_check_branch
      %70 = sbr.rel (0) target = $region29
    $region28: #{tpu_custom_call.1} parent=1 // pred_region
      %71 = dma.done [#allocation6], 16384
    $region29: #{tpu_custom_call.1} parent=1 // pred_fallthru
      _
    // Predicated region
    $region30: #{tpu_custom_call.1} parent=1 // pred_check
      _
    $region31: #{tpu_custom_call.1} parent=1 // pred_check_branch
      %73 = sbr.rel (0) target = $region33
    $region32: #{tpu_custom_call.1} parent=1 // pred_region
      %74 = dma.done [#allocation9], 16384
    $region33: #{tpu_custom_call.1} parent=1 // pred_fallthru
      _
    %v75 = vld [vmem:[#allocation2] sm:$0xff]
    %v76 = vld [vmem:[#allocation2 + $0x8] sm:$0xff]
    %v77 = vld [vmem:[#allocation5] sm:$0xff]
    %v78 = vld [vmem:[#allocation5 + $0x8] sm:$0xff]
    %v79 = vld [vmem:[#allocation5 + $0x10] sm:$0xff]
    %v80 = vld [vmem:[#allocation5 + $0x18] sm:$0xff]
    %v81 = vld [vmem:[#allocation5 + $0x20] sm:$0xff]
    %v82 = vld [vmem:[#allocation5 + $0x28] sm:$0xff]
    %v83 = vld [vmem:[#allocation5 + $0x30] sm:$0xff]
    %v84 = vld [vmem:[#allocation5 + $0x38] sm:$0xff]
    %v85 = vld [vmem:[#allocation5 + $0x40] sm:$0xff]
    %v86 = vld [vmem:[#allocation5 + $0x48] sm:$0xff]
    %v87 = vld [vmem:[#allocation5 + $0x50] sm:$0xff]
    %v88 = vld [vmem:[#allocation5 + $0x58] sm:$0xff]
    %v89 = vld [vmem:[#allocation5 + $0x60] sm:$0xff]
    %v90 = vld [vmem:[#allocation5 + $0x68] sm:$0xff]
    %v91 = vld [vmem:[#allocation5 + $0x70] sm:$0xff]
    %v92 = vld [vmem:[#allocation5 + $0x78] sm:$0xff]
    %v93 = vld [vmem:[#allocation5 + $0x80] sm:$0xff]
    %v94 = vld [vmem:[#allocation5 + $0x88] sm:$0xff]
    %v95 = vld [vmem:[#allocation5 + $0x90] sm:$0xff]
    %v96 = vld [vmem:[#allocation5 + $0x98] sm:$0xff]
    %v97 = vld [vmem:[#allocation5 + $0xa0] sm:$0xff]
    %v98 = vld [vmem:[#allocation5 + $0xa8] sm:$0xff]
    %v99 = vld [vmem:[#allocation5 + $0xb0] sm:$0xff]
    %v100 = vld [vmem:[#allocation5 + $0xb8] sm:$0xff]
    %v101 = vld [vmem:[#allocation5 + $0xc0] sm:$0xff]
    %v102 = vld [vmem:[#allocation5 + $0xc8] sm:$0xff]
    %v103 = vld [vmem:[#allocation5 + $0xd0] sm:$0xff]
    %v104 = vld [vmem:[#allocation5 + $0xd8] sm:$0xff]
    %v105 = vld [vmem:[#allocation5 + $0xe0] sm:$0xff]
    %v106 = vld [vmem:[#allocation5 + $0xe8] sm:$0xff]
    %v107 = vld [vmem:[#allocation5 + $0xf0] sm:$0xff]
    %v108 = vld [vmem:[#allocation5 + $0xf8] sm:$0xff]
    %v109 = vld [vmem:[#allocation5 + $0x100] sm:$0xff]
    %v110 = vld [vmem:[#allocation5 + $0x108] sm:$0xff]
    %v111 = vld [vmem:[#allocation5 + $0x110] sm:$0xff]
    %v112 = vld [vmem:[#allocation5 + $0x118] sm:$0xff]
    %v113 = vld [vmem:[#allocation5 + $0x120] sm:$0xff]
    %v114 = vld [vmem:[#allocation5 + $0x128] sm:$0xff]
    %v115 = vld [vmem:[#allocation5 + $0x130] sm:$0xff]
    %v116 = vld [vmem:[#allocation5 + $0x138] sm:$0xff]
    %v117 = vld [vmem:[#allocation5 + $0x140] sm:$0xff]
    %v118 = vld [vmem:[#allocation5 + $0x148] sm:$0xff]
    %v119 = vld [vmem:[#allocation5 + $0x150] sm:$0xff]
    %v120 = vld [vmem:[#allocation5 + $0x158] sm:$0xff]
    %v121 = vld [vmem:[#allocation5 + $0x160] sm:$0xff]
    %v122 = vld [vmem:[#allocation5 + $0x168] sm:$0xff]
    %v123 = vld [vmem:[#allocation5 + $0x170] sm:$0xff]
    %v124 = vld [vmem:[#allocation5 + $0x178] sm:$0xff]
    %v125 = vld [vmem:[#allocation5 + $0x180] sm:$0xff]
    %v126 = vld [vmem:[#allocation5 + $0x188] sm:$0xff]
    %v127 = vld [vmem:[#allocation5 + $0x190] sm:$0xff]
    %v128 = vld [vmem:[#allocation5 + $0x198] sm:$0xff]
    %v129 = vld [vmem:[#allocation5 + $0x1a0] sm:$0xff]
    %v130 = vld [vmem:[#allocation5 + $0x1a8] sm:$0xff]
    %v131 = vld [vmem:[#allocation5 + $0x1b0] sm:$0xff]
    %v132 = vld [vmem:[#allocation5 + $0x1b8] sm:$0xff]
    %v133 = vld [vmem:[#allocation5 + $0x1c0] sm:$0xff]
    %v134 = vld [vmem:[#allocation5 + $0x1c8] sm:$0xff]
    %v135 = vld [vmem:[#allocation5 + $0x1d0] sm:$0xff]
    %v136 = vld [vmem:[#allocation5 + $0x1d8] sm:$0xff]
    %v137 = vld [vmem:[#allocation5 + $0x1e0] sm:$0xff]
    %v138 = vld [vmem:[#allocation5 + $0x1e8] sm:$0xff]
    %v139 = vld [vmem:[#allocation5 + $0x1f0] sm:$0xff]
    %v140 = vld [vmem:[#allocation5 + $0x1f8] sm:$0xff]
    %v141 = vld [vmem:[#allocation5 + $0x200] sm:$0xff]
    %v142 = vld [vmem:[#allocation5 + $0x208] sm:$0xff]
    %v143 = vld [vmem:[#allocation5 + $0x210] sm:$0xff]
    %v144 = vld [vmem:[#allocation5 + $0x218] sm:$0xff]
    %v145 = vld [vmem:[#allocation5 + $0x220] sm:$0xff]
    %v146 = vld [vmem:[#allocation5 + $0x228] sm:$0xff]
    %v147 = vld [vmem:[#allocation5 + $0x230] sm:$0xff]
    %v148 = vld [vmem:[#allocation5 + $0x238] sm:$0xff]
    %v149 = vld [vmem:[#allocation5 + $0x240] sm:$0xff]
    %v150 = vld [vmem:[#allocation5 + $0x248] sm:$0xff]
    %v151 = vld [vmem:[#allocation5 + $0x250] sm:$0xff]
    %v152 = vld [vmem:[#allocation5 + $0x258] sm:$0xff]
    %v153 = vld [vmem:[#allocation5 + $0x260] sm:$0xff]
    %v154 = vld [vmem:[#allocation5 + $0x268] sm:$0xff]
    %v155 = vld [vmem:[#allocation5 + $0x270] sm:$0xff]
    %v156 = vld [vmem:[#allocation5 + $0x278] sm:$0xff]
    %v157 = vld [vmem:[#allocation5 + $0x280] sm:$0xff]
    %v158 = vld [vmem:[#allocation5 + $0x288] sm:$0xff]
    %v159 = vld [vmem:[#allocation5 + $0x290] sm:$0xff]
    %v160 = vld [vmem:[#allocation5 + $0x298] sm:$0xff]
    %v161 = vld [vmem:[#allocation5 + $0x2a0] sm:$0xff]
    %v162 = vld [vmem:[#allocation5 + $0x2a8] sm:$0xff]
    %v163 = vld [vmem:[#allocation5 + $0x2b0] sm:$0xff]
    %v164 = vld [vmem:[#allocation5 + $0x2b8] sm:$0xff]
    %v165 = vld [vmem:[#allocation5 + $0x2c0] sm:$0xff]
    %v166 = vld [vmem:[#allocation5 + $0x2c8] sm:$0xff]
    %v167 = vld [vmem:[#allocation5 + $0x2d0] sm:$0xff]
    %v168 = vld [vmem:[#allocation5 + $0x2d8] sm:$0xff]
    %v169 = vld [vmem:[#allocation5 + $0x2e0] sm:$0xff]
    %v170 = vld [vmem:[#allocation5 + $0x2e8] sm:$0xff]
    %v171 = vld [vmem:[#allocation5 + $0x2f0] sm:$0xff]
    %v172 = vld [vmem:[#allocation5 + $0x2f8] sm:$0xff]
    %v173 = vld [vmem:[#allocation5 + $0x300] sm:$0xff]
    %v174 = vld [vmem:[#allocation5 + $0x308] sm:$0xff]
    %v175 = vld [vmem:[#allocation5 + $0x310] sm:$0xff]
    %v176 = vld [vmem:[#allocation5 + $0x318] sm:$0xff]
    %v177 = vld [vmem:[#allocation5 + $0x320] sm:$0xff]
    %v178 = vld [vmem:[#allocation5 + $0x328] sm:$0xff]
    %v179 = vld [vmem:[#allocation5 + $0x330] sm:$0xff]
    %v180 = vld [vmem:[#allocation5 + $0x338] sm:$0xff]
    %v181 = vld [vmem:[#allocation5 + $0x340] sm:$0xff]
    %v182 = vld [vmem:[#allocation5 + $0x348] sm:$0xff]
    %v183 = vld [vmem:[#allocation5 + $0x350] sm:$0xff]
    %v184 = vld [vmem:[#allocation5 + $0x358] sm:$0xff]
    %v185 = vld [vmem:[#allocation5 + $0x360] sm:$0xff]
    %v186 = vld [vmem:[#allocation5 + $0x368] sm:$0xff]
    %v187 = vld [vmem:[#allocation5 + $0x370] sm:$0xff]
    %v188 = vld [vmem:[#allocation5 + $0x378] sm:$0xff]
    %v189 = vld [vmem:[#allocation5 + $0x380] sm:$0xff]
    %v190 = vld [vmem:[#allocation5 + $0x388] sm:$0xff]
    %v191 = vld [vmem:[#allocation5 + $0x390] sm:$0xff]
    %v192 = vld [vmem:[#allocation5 + $0x398] sm:$0xff]
    %v193 = vld [vmem:[#allocation5 + $0x3a0] sm:$0xff]
    %v194 = vld [vmem:[#allocation5 + $0x3a8] sm:$0xff]
    %v195 = vld [vmem:[#allocation5 + $0x3b0] sm:$0xff]
    %v196 = vld [vmem:[#allocation5 + $0x3b8] sm:$0xff]
    %v197 = vld [vmem:[#allocation5 + $0x3c0] sm:$0xff]
    %v198 = vld [vmem:[#allocation5 + $0x3c8] sm:$0xff]
    %v199 = vld [vmem:[#allocation5 + $0x3d0] sm:$0xff]
    %v200 = vld [vmem:[#allocation5 + $0x3d8] sm:$0xff]
    %v201 = vld [vmem:[#allocation5 + $0x3e0] sm:$0xff]
    %v202 = vld [vmem:[#allocation5 + $0x3e8] sm:$0xff]
    %v203 = vld [vmem:[#allocation5 + $0x3f0] sm:$0xff]
    %v204 = vld [vmem:[#allocation5 + $0x3f8] sm:$0xff]
    %v207 = vunpack.c.l.b16 %v75
    %v208 = vunpack.c.h.b16 %v75
    %v209 = vunpack.c.l.b16 %v76
    %v210 = vunpack.c.h.b16 %v76
    %v211 = vpack.c.b16 %v207, %v207
    %v212 = vpack.c.b16 %v208, %v208
    %v213 = vpack.c.b16 %v209, %v209
    %v214 = vpack.c.b16 %v210, %v210
    %v347 = vunpack.c.l.b16 %v77
    %v348 = vunpack.c.h.b16 %v77
    %v349 = vunpack.c.l.b16 %v78
    %v350 = vunpack.c.h.b16 %v78
    %v351 = vunpack.c.l.b16 %v79
    %v352 = vunpack.c.h.b16 %v79
    %v353 = vunpack.c.l.b16 %v80
    %v354 = vunpack.c.h.b16 %v80
    %v355 = vunpack.c.l.b16 %v81
    %v356 = vunpack.c.h.b16 %v81
    %v357 = vunpack.c.l.b16 %v82
    %v358 = vunpack.c.h.b16 %v82
    %v359 = vunpack.c.l.b16 %v83
    %v360 = vunpack.c.h.b16 %v83
    %v361 = vunpack.c.l.b16 %v84
    %v362 = vunpack.c.h.b16 %v84
    %v363 = vunpack.c.l.b16 %v85
    %v364 = vunpack.c.h.b16 %v85
    %v365 = vunpack.c.l.b16 %v86
    %v366 = vunpack.c.h.b16 %v86
    %v367 = vunpack.c.l.b16 %v87
    %v368 = vunpack.c.h.b16 %v87
    %v369 = vunpack.c.l.b16 %v88
    %v370 = vunpack.c.h.b16 %v88
    %v371 = vunpack.c.l.b16 %v89
    %v372 = vunpack.c.h.b16 %v89
    %v373 = vunpack.c.l.b16 %v90
    %v374 = vunpack.c.h.b16 %v90
    %v375 = vunpack.c.l.b16 %v91
    %v376 = vunpack.c.h.b16 %v91
    %v377 = vunpack.c.l.b16 %v92
    %v378 = vunpack.c.h.b16 %v92
    %v379 = vunpack.c.l.b16 %v93
    %v380 = vunpack.c.h.b16 %v93
    %v381 = vunpack.c.l.b16 %v94
    %v382 = vunpack.c.h.b16 %v94
    %v383 = vunpack.c.l.b16 %v95
    %v384 = vunpack.c.h.b16 %v95
    %v385 = vunpack.c.l.b16 %v96
    %v386 = vunpack.c.h.b16 %v96
    %v387 = vunpack.c.l.b16 %v97
    %v388 = vunpack.c.h.b16 %v97
    %v389 = vunpack.c.l.b16 %v98
    %v390 = vunpack.c.h.b16 %v98
    %v391 = vunpack.c.l.b16 %v99
    %v392 = vunpack.c.h.b16 %v99
    %v393 = vunpack.c.l.b16 %v100
    %v394 = vunpack.c.h.b16 %v100
    %v395 = vunpack.c.l.b16 %v101
    %v396 = vunpack.c.h.b16 %v101
    %v397 = vunpack.c.l.b16 %v102
    %v398 = vunpack.c.h.b16 %v102
    %v399 = vunpack.c.l.b16 %v103
    %v400 = vunpack.c.h.b16 %v103
    %v401 = vunpack.c.l.b16 %v104
    %v402 = vunpack.c.h.b16 %v104
    %v403 = vunpack.c.l.b16 %v105
    %v404 = vunpack.c.h.b16 %v105
    %v405 = vunpack.c.l.b16 %v106
    %v406 = vunpack.c.h.b16 %v106
    %v407 = vunpack.c.l.b16 %v107
    %v408 = vunpack.c.h.b16 %v107
    %v409 = vunpack.c.l.b16 %v108
    %v410 = vunpack.c.h.b16 %v108
    %v411 = vunpack.c.l.b16 %v109
    %v412 = vunpack.c.h.b16 %v109
    %v413 = vunpack.c.l.b16 %v110
    %v414 = vunpack.c.h.b16 %v110
    %v415 = vunpack.c.l.b16 %v111
    %v416 = vunpack.c.h.b16 %v111
    %v417 = vunpack.c.l.b16 %v112
    %v418 = vunpack.c.h.b16 %v112
    %v419 = vunpack.c.l.b16 %v113
    %v420 = vunpack.c.h.b16 %v113
    %v421 = vunpack.c.l.b16 %v114
    %v422 = vunpack.c.h.b16 %v114
    %v423 = vunpack.c.l.b16 %v115
    %v424 = vunpack.c.h.b16 %v115
    %v425 = vunpack.c.l.b16 %v116
    %v426 = vunpack.c.h.b16 %v116
    %v427 = vunpack.c.l.b16 %v117
    %v428 = vunpack.c.h.b16 %v117
    %v429 = vunpack.c.l.b16 %v118
    %v430 = vunpack.c.h.b16 %v118
    %v431 = vunpack.c.l.b16 %v119
    %v432 = vunpack.c.h.b16 %v119
    %v433 = vunpack.c.l.b16 %v120
    %v434 = vunpack.c.h.b16 %v120
    %v435 = vunpack.c.l.b16 %v121
    %v436 = vunpack.c.h.b16 %v121
    %v437 = vunpack.c.l.b16 %v122
    %v438 = vunpack.c.h.b16 %v122
    %v439 = vunpack.c.l.b16 %v123
    %v440 = vunpack.c.h.b16 %v123
    %v441 = vunpack.c.l.b16 %v124
    %v442 = vunpack.c.h.b16 %v124
    %v443 = vunpack.c.l.b16 %v125
    %v444 = vunpack.c.h.b16 %v125
    %v445 = vunpack.c.l.b16 %v126
    %v446 = vunpack.c.h.b16 %v126
    %v447 = vunpack.c.l.b16 %v127
    %v448 = vunpack.c.h.b16 %v127
    %v449 = vunpack.c.l.b16 %v128
    %v450 = vunpack.c.h.b16 %v128
    %v451 = vunpack.c.l.b16 %v129
    %v452 = vunpack.c.h.b16 %v129
    %v453 = vunpack.c.l.b16 %v130
    %v454 = vunpack.c.h.b16 %v130
    %v455 = vunpack.c.l.b16 %v131
    %v456 = vunpack.c.h.b16 %v131
    %v457 = vunpack.c.l.b16 %v132
    %v458 = vunpack.c.h.b16 %v132
    %v459 = vunpack.c.l.b16 %v133
    %v460 = vunpack.c.h.b16 %v133
    %v461 = vunpack.c.l.b16 %v134
    %v462 = vunpack.c.h.b16 %v134
    %v463 = vunpack.c.l.b16 %v135
    %v464 = vunpack.c.h.b16 %v135
    %v465 = vunpack.c.l.b16 %v136
    %v466 = vunpack.c.h.b16 %v136
    %v467 = vunpack.c.l.b16 %v137
    %v468 = vunpack.c.h.b16 %v137
    %v469 = vunpack.c.l.b16 %v138
    %v470 = vunpack.c.h.b16 %v138
    %v471 = vunpack.c.l.b16 %v139
    %v472 = vunpack.c.h.b16 %v139
    %v473 = vunpack.c.l.b16 %v140
    %v474 = vunpack.c.h.b16 %v140
    %v475 = vunpack.c.l.b16 %v141
    %v476 = vunpack.c.h.b16 %v141
    %v477 = vunpack.c.l.b16 %v142
    %v478 = vunpack.c.h.b16 %v142
    %v479 = vunpack.c.l.b16 %v143
    %v480 = vunpack.c.h.b16 %v143
    %v481 = vunpack.c.l.b16 %v144
    %v482 = vunpack.c.h.b16 %v144
    %v483 = vunpack.c.l.b16 %v145
    %v484 = vunpack.c.h.b16 %v145
    %v485 = vunpack.c.l.b16 %v146
    %v486 = vunpack.c.h.b16 %v146
    %v487 = vunpack.c.l.b16 %v147
    %v488 = vunpack.c.h.b16 %v147
    %v489 = vunpack.c.l.b16 %v148
    %v490 = vunpack.c.h.b16 %v148
    %v491 = vunpack.c.l.b16 %v149
    %v492 = vunpack.c.h.b16 %v149
    %v493 = vunpack.c.l.b16 %v150
    %v494 = vunpack.c.h.b16 %v150
    %v495 = vunpack.c.l.b16 %v151
    %v496 = vunpack.c.h.b16 %v151
    %v497 = vunpack.c.l.b16 %v152
    %v498 = vunpack.c.h.b16 %v152
    %v499 = vunpack.c.l.b16 %v153
    %v500 = vunpack.c.h.b16 %v153
    %v501 = vunpack.c.l.b16 %v154
    %v502 = vunpack.c.h.b16 %v154
    %v503 = vunpack.c.l.b16 %v155
    %v504 = vunpack.c.h.b16 %v155
    %v505 = vunpack.c.l.b16 %v156
    %v506 = vunpack.c.h.b16 %v156
    %v507 = vunpack.c.l.b16 %v157
    %v508 = vunpack.c.h.b16 %v157
    %v509 = vunpack.c.l.b16 %v158
    %v510 = vunpack.c.h.b16 %v158
    %v511 = vunpack.c.l.b16 %v159
    %v512 = vunpack.c.h.b16 %v159
    %v513 = vunpack.c.l.b16 %v160
    %v514 = vunpack.c.h.b16 %v160
    %v515 = vunpack.c.l.b16 %v161
    %v516 = vunpack.c.h.b16 %v161
    %v517 = vunpack.c.l.b16 %v162
    %v518 = vunpack.c.h.b16 %v162
    %v519 = vunpack.c.l.b16 %v163
    %v520 = vunpack.c.h.b16 %v163
    %v521 = vunpack.c.l.b16 %v164
    %v522 = vunpack.c.h.b16 %v164
    %v523 = vunpack.c.l.b16 %v165
    %v524 = vunpack.c.h.b16 %v165
    %v525 = vunpack.c.l.b16 %v166
    %v526 = vunpack.c.h.b16 %v166
    %v527 = vunpack.c.l.b16 %v167
    %v528 = vunpack.c.h.b16 %v167
    %v529 = vunpack.c.l.b16 %v168
    %v530 = vunpack.c.h.b16 %v168
    %v531 = vunpack.c.l.b16 %v169
    %v532 = vunpack.c.h.b16 %v169
    %v533 = vunpack.c.l.b16 %v170
    %v534 = vunpack.c.h.b16 %v170
    %v535 = vunpack.c.l.b16 %v171
    %v536 = vunpack.c.h.b16 %v171
    %v537 = vunpack.c.l.b16 %v172
    %v538 = vunpack.c.h.b16 %v172
    %v539 = vunpack.c.l.b16 %v173
    %v540 = vunpack.c.h.b16 %v173
    %v541 = vunpack.c.l.b16 %v174
    %v542 = vunpack.c.h.b16 %v174
    %v543 = vunpack.c.l.b16 %v175
    %v544 = vunpack.c.h.b16 %v175
    %v545 = vunpack.c.l.b16 %v176
    %v546 = vunpack.c.h.b16 %v176
    %v547 = vunpack.c.l.b16 %v177
    %v548 = vunpack.c.h.b16 %v177
    %v549 = vunpack.c.l.b16 %v178
    %v550 = vunpack.c.h.b16 %v178
    %v551 = vunpack.c.l.b16 %v179
    %v552 = vunpack.c.h.b16 %v179
    %v553 = vunpack.c.l.b16 %v180
    %v554 = vunpack.c.h.b16 %v180
    %v555 = vunpack.c.l.b16 %v181
    %v556 = vunpack.c.h.b16 %v181
    %v557 = vunpack.c.l.b16 %v182
    %v558 = vunpack.c.h.b16 %v182
    %v559 = vunpack.c.l.b16 %v183
    %v560 = vunpack.c.h.b16 %v183
    %v561 = vunpack.c.l.b16 %v184
    %v562 = vunpack.c.h.b16 %v184
    %v563 = vunpack.c.l.b16 %v185
    %v564 = vunpack.c.h.b16 %v185
    %v565 = vunpack.c.l.b16 %v186
    %v566 = vunpack.c.h.b16 %v186
    %v567 = vunpack.c.l.b16 %v187
    %v568 = vunpack.c.h.b16 %v187
    %v569 = vunpack.c.l.b16 %v188
    %v570 = vunpack.c.h.b16 %v188
    %v571 = vunpack.c.l.b16 %v189
    %v572 = vunpack.c.h.b16 %v189
    %v573 = vunpack.c.l.b16 %v190
    %v574 = vunpack.c.h.b16 %v190
    %v575 = vunpack.c.l.b16 %v191
    %v576 = vunpack.c.h.b16 %v191
    %v577 = vunpack.c.l.b16 %v192
    %v578 = vunpack.c.h.b16 %v192
    %v579 = vunpack.c.l.b16 %v193
    %v580 = vunpack.c.h.b16 %v193
    %v581 = vunpack.c.l.b16 %v194
    %v582 = vunpack.c.h.b16 %v194
    %v583 = vunpack.c.l.b16 %v195
    %v584 = vunpack.c.h.b16 %v195
    %v585 = vunpack.c.l.b16 %v196
    %v586 = vunpack.c.h.b16 %v196
    %v587 = vunpack.c.l.b16 %v197
    %v588 = vunpack.c.h.b16 %v197
    %v589 = vunpack.c.l.b16 %v198
    %v590 = vunpack.c.h.b16 %v198
    %v591 = vunpack.c.l.b16 %v199
    %v592 = vunpack.c.h.b16 %v199
    %v593 = vunpack.c.l.b16 %v200
    %v594 = vunpack.c.h.b16 %v200
    %v595 = vunpack.c.l.b16 %v201
    %v596 = vunpack.c.h.b16 %v201
    %v597 = vunpack.c.l.b16 %v202
    %v598 = vunpack.c.h.b16 %v202
    %v599 = vunpack.c.l.b16 %v203
    %v600 = vunpack.c.h.b16 %v203
    %v601 = vunpack.c.l.b16 %v204
    %v602 = vunpack.c.h.b16 %v204
    %v603 = vpack.c.b16 %v351, %v347
    %v604 = vpack.c.b16 %v352, %v348
    %v605 = vpack.c.b16 %v353, %v349
    %v606 = vpack.c.b16 %v354, %v350
    %v607 = vpack.c.b16 %v359, %v355
    %v608 = vpack.c.b16 %v360, %v356
    %v609 = vpack.c.b16 %v361, %v357
    %v610 = vpack.c.b16 %v362, %v358
    %v611 = vpack.c.b16 %v367, %v363
    %v612 = vpack.c.b16 %v368, %v364
    %v613 = vpack.c.b16 %v369, %v365
    %v614 = vpack.c.b16 %v370, %v366
    %v615 = vpack.c.b16 %v375, %v371
    %v616 = vpack.c.b16 %v376, %v372
    %v617 = vpack.c.b16 %v377, %v373
    %v618 = vpack.c.b16 %v378, %v374
    %v619 = vpack.c.b16 %v383, %v379
    %v620 = vpack.c.b16 %v384, %v380
    %v621 = vpack.c.b16 %v385, %v381
    %v622 = vpack.c.b16 %v386, %v382
    %v623 = vpack.c.b16 %v391, %v387
    %v624 = vpack.c.b16 %v392, %v388
    %v625 = vpack.c.b16 %v393, %v389
    %v626 = vpack.c.b16 %v394, %v390
    %v627 = vpack.c.b16 %v399, %v395
    %v628 = vpack.c.b16 %v400, %v396
    %v629 = vpack.c.b16 %v401, %v397
    %v630 = vpack.c.b16 %v402, %v398
    %v631 = vpack.c.b16 %v407, %v403
    %v632 = vpack.c.b16 %v408, %v404
    %v633 = vpack.c.b16 %v409, %v405
    %v634 = vpack.c.b16 %v410, %v406
    %v635 = vpack.c.b16 %v415, %v411
    %v636 = vpack.c.b16 %v416, %v412
    %v637 = vpack.c.b16 %v417, %v413
    %v638 = vpack.c.b16 %v418, %v414
    %v639 = vpack.c.b16 %v423, %v419
    %v640 = vpack.c.b16 %v424, %v420
    %v641 = vpack.c.b16 %v425, %v421
    %v642 = vpack.c.b16 %v426, %v422
    %v643 = vpack.c.b16 %v431, %v427
    %v644 = vpack.c.b16 %v432, %v428
    %v645 = vpack.c.b16 %v433, %v429
    %v646 = vpack.c.b16 %v434, %v430
    %v647 = vpack.c.b16 %v439, %v435
    %v648 = vpack.c.b16 %v440, %v436
    %v649 = vpack.c.b16 %v441, %v437
    %v650 = vpack.c.b16 %v442, %v438
    %v651 = vpack.c.b16 %v447, %v443
    %v652 = vpack.c.b16 %v448, %v444
    %v653 = vpack.c.b16 %v449, %v445
    %v654 = vpack.c.b16 %v450, %v446
    %v655 = vpack.c.b16 %v455, %v451
    %v656 = vpack.c.b16 %v456, %v452
    %v657 = vpack.c.b16 %v457, %v453
    %v658 = vpack.c.b16 %v458, %v454
    %v659 = vpack.c.b16 %v463, %v459
    %v660 = vpack.c.b16 %v464, %v460
    %v661 = vpack.c.b16 %v465, %v461
    %v662 = vpack.c.b16 %v466, %v462
    %v663 = vpack.c.b16 %v471, %v467
    %v664 = vpack.c.b16 %v472, %v468
    %v665 = vpack.c.b16 %v473, %v469
    %v666 = vpack.c.b16 %v474, %v470
    %v667 = vpack.c.b16 %v479, %v475
    %v668 = vpack.c.b16 %v480, %v476
    %v669 = vpack.c.b16 %v481, %v477
    %v670 = vpack.c.b16 %v482, %v478
    %v671 = vpack.c.b16 %v487, %v483
    %v672 = vpack.c.b16 %v488, %v484
    %v673 = vpack.c.b16 %v489, %v485
    %v674 = vpack.c.b16 %v490, %v486
    %v675 = vpack.c.b16 %v495, %v491
    %v676 = vpack.c.b16 %v496, %v492
    %v677 = vpack.c.b16 %v497, %v493
    %v678 = vpack.c.b16 %v498, %v494
    %v679 = vpack.c.b16 %v503, %v499
    %v680 = vpack.c.b16 %v504, %v500
    %v681 = vpack.c.b16 %v505, %v501
    %v682 = vpack.c.b16 %v506, %v502
    %v683 = vpack.c.b16 %v511, %v507
    %v684 = vpack.c.b16 %v512, %v508
    %v685 = vpack.c.b16 %v513, %v509
    %v686 = vpack.c.b16 %v514, %v510
    %v687 = vpack.c.b16 %v519, %v515
    %v688 = vpack.c.b16 %v520, %v516
    %v689 = vpack.c.b16 %v521, %v517
    %v690 = vpack.c.b16 %v522, %v518
    %v691 = vpack.c.b16 %v527, %v523
    %v692 = vpack.c.b16 %v528, %v524
    %v693 = vpack.c.b16 %v529, %v525
    %v694 = vpack.c.b16 %v530, %v526
    %v695 = vpack.c.b16 %v535, %v531
    %v696 = vpack.c.b16 %v536, %v532
    %v697 = vpack.c.b16 %v537, %v533
    %v698 = vpack.c.b16 %v538, %v534
    %v699 = vpack.c.b16 %v543, %v539
    %v700 = vpack.c.b16 %v544, %v540
    %v701 = vpack.c.b16 %v545, %v541
    %v702 = vpack.c.b16 %v546, %v542
    %v703 = vpack.c.b16 %v551, %v547
    %v704 = vpack.c.b16 %v552, %v548
    %v705 = vpack.c.b16 %v553, %v549
    %v706 = vpack.c.b16 %v554, %v550
    %v707 = vpack.c.b16 %v559, %v555
    %v708 = vpack.c.b16 %v560, %v556
    %v709 = vpack.c.b16 %v561, %v557
    %v710 = vpack.c.b16 %v562, %v558
    %v711 = vpack.c.b16 %v567, %v563
    %v712 = vpack.c.b16 %v568, %v564
    %v713 = vpack.c.b16 %v569, %v565
    %v714 = vpack.c.b16 %v570, %v566
    %v715 = vpack.c.b16 %v575, %v571
    %v716 = vpack.c.b16 %v576, %v572
    %v717 = vpack.c.b16 %v577, %v573
    %v718 = vpack.c.b16 %v578, %v574
    %v719 = vpack.c.b16 %v583, %v579
    %v720 = vpack.c.b16 %v584, %v580
    %v721 = vpack.c.b16 %v585, %v581
    %v722 = vpack.c.b16 %v586, %v582
    %v723 = vpack.c.b16 %v591, %v587
    %v724 = vpack.c.b16 %v592, %v588
    %v725 = vpack.c.b16 %v593, %v589
    %v726 = vpack.c.b16 %v594, %v590
    %v727 = vpack.c.b16 %v599, %v595
    %v728 = vpack.c.b16 %v600, %v596
    %v729 = vpack.c.b16 %v601, %v597
    %v730 = vpack.c.b16 %v602, %v598
    %859 = vmatprep.subr.bf16.mxu0 %v632
    %860 = vmatpush1.bf16.msra.mxu0 %v631
    %861 = vmatprep.subr.bf16.mxu0 %v628
    %862 = vmatpush1.bf16.msra.mxu0 %v627
    %863 = vmatprep.subr.bf16.mxu0 %v624
    %864 = vmatpush1.bf16.msra.mxu0 %v623
    %865 = vmatprep.subr.bf16.mxu0 %v620
    %866 = vmatpush1.bf16.msra.mxu0 %v619
    %867 = vmatprep.subr.bf16.mxu0 %v616
    %868 = vmatpush1.bf16.msra.mxu0 %v615
    %869 = vmatprep.subr.bf16.mxu0 %v612
    %870 = vmatpush1.bf16.msra.mxu0 %v611
    %871 = vmatprep.subr.bf16.mxu0 %v608
    %872 = vmatpush1.bf16.msra.mxu0 %v607
    %873 = vmatprep.subr.bf16.mxu0 %v604
    %874 = vmatpush1.bf16.msra.mxu0 %v603
    %875 = vmatprep.subr.bf16.mxu0 %v664
    %876 = vmatpush2.bf16.msra.mxu0 %v663
    %877 = vmatprep.subr.bf16.mxu0 %v660
    %878 = vmatpush2.bf16.msra.mxu0 %v659
    %879 = vmatprep.subr.bf16.mxu0 %v656
    %880 = vmatpush2.bf16.msra.mxu0 %v655
    %881 = vmatprep.subr.bf16.mxu0 %v652
    %882 = vmatpush2.bf16.msra.mxu0 %v651
    %883 = vmatprep.subr.bf16.mxu0 %v648
    %884 = vmatpush2.bf16.msra.mxu0 %v647
    %885 = vmatprep.subr.bf16.mxu0 %v644
    %886 = vmatpush2.bf16.msra.mxu0 %v643
    %887 = vmatprep.subr.bf16.mxu0 %v640
    %888 = vmatpush2.bf16.msra.mxu0 %v639
    %889 = vmatprep.subr.bf16.mxu0 %v636
    %890 = vmatpush2.bf16.msra.mxu0 %v635
    %891 = vmatprep.mubr.bf16.mxu0 %v212
    %892 = vmatmul.mubr.bf16.gmra.mxu0 %v211
    %v893 = vpop.f32.mrf.mxu0
    %v894 = vadd.f32 0.0, %v893
    %v895 = vpop.f32.mrf.mxu0
    %v896 = vadd.f32 0.0, %v895
    %v897 = vpop.f32.mrf.mxu0
    %v898 = vpop.f32.mrf.mxu0
    %899 = vdwg.mxu0
    %900 = vmatprep.subr.bf16.mxu0 %v696
    %901 = vmatpush1.bf16.msra.mxu0 %v695
    %902 = vmatprep.subr.bf16.mxu0 %v692
    %903 = vmatpush1.bf16.msra.mxu0 %v691
    %904 = vmatprep.subr.bf16.mxu0 %v688
    %905 = vmatpush1.bf16.msra.mxu0 %v687
    %906 = vmatprep.subr.bf16.mxu0 %v684
    %907 = vmatpush1.bf16.msra.mxu0 %v683
    %908 = vmatprep.subr.bf16.mxu0 %v680
    %909 = vmatpush1.bf16.msra.mxu0 %v679
    %910 = vmatprep.subr.bf16.mxu0 %v676
    %911 = vmatpush1.bf16.msra.mxu0 %v675
    %912 = vmatprep.subr.bf16.mxu0 %v672
    %913 = vmatpush1.bf16.msra.mxu0 %v671
    %914 = vmatprep.subr.bf16.mxu0 %v668
    %915 = vmatpush1.bf16.msra.mxu0 %v667
    %916 = vmatprep.subr.bf16.mxu0 %v728
    %917 = vmatpush2.bf16.msra.mxu0 %v727
    %918 = vmatprep.subr.bf16.mxu0 %v724
    %919 = vmatpush2.bf16.msra.mxu0 %v723
    %920 = vmatprep.subr.bf16.mxu0 %v720
    %921 = vmatpush2.bf16.msra.mxu0 %v719
    %922 = vmatprep.subr.bf16.mxu0 %v716
    %923 = vmatpush2.bf16.msra.mxu0 %v715
    %924 = vmatprep.subr.bf16.mxu0 %v712
    %925 = vmatpush2.bf16.msra.mxu0 %v711
    %926 = vmatprep.subr.bf16.mxu0 %v708
    %927 = vmatpush2.bf16.msra.mxu0 %v707
    %928 = vmatprep.subr.bf16.mxu0 %v704
    %929 = vmatpush2.bf16.msra.mxu0 %v703
    %930 = vmatprep.subr.bf16.mxu0 %v700
    %931 = vmatpush2.bf16.msra.mxu0 %v699
    %932 = vmatprep.mubr.bf16.mxu0 %v214
    %933 = vmatmul.mubr.bf16.gmra.mxu0 %v213
    %v934 = vpop.f32.mrf.mxu0
    %v935 = vadd.f32 %v894, %v934
    %v936 = vpop.f32.mrf.mxu0
    %v937 = vadd.f32 %v896, %v936
    %v938 = vpop.f32.mrf.mxu0
    %v939 = vpop.f32.mrf.mxu0
    %940 = vdwg.mxu0
    %941 = vmatprep.subr.bf16.mxu0 %v634
    %942 = vmatpush1.bf16.msra.mxu0 %v633
    %943 = vmatprep.subr.bf16.mxu0 %v630
    %944 = vmatpush1.bf16.msra.mxu0 %v629
    %945 = vmatprep.subr.bf16.mxu0 %v626
    %946 = vmatpush1.bf16.msra.mxu0 %v625
    %947 = vmatprep.subr.bf16.mxu0 %v622
    %948 = vmatpush1.bf16.msra.mxu0 %v621
    %949 = vmatprep.subr.bf16.mxu0 %v618
    %950 = vmatpush1.bf16.msra.mxu0 %v617
    %951 = vmatprep.subr.bf16.mxu0 %v614
    %952 = vmatpush1.bf16.msra.mxu0 %v613
    %953 = vmatprep.subr.bf16.mxu0 %v610
    %954 = vmatpush1.bf16.msra.mxu0 %v609
    %955 = vmatprep.subr.bf16.mxu0 %v606
    %956 = vmatpush1.bf16.msra.mxu0 %v605
    %957 = vmatprep.subr.bf16.mxu0 %v666
    %958 = vmatpush2.bf16.msra.mxu0 %v665
    %959 = vmatprep.subr.bf16.mxu0 %v662
    %960 = vmatpush2.bf16.msra.mxu0 %v661
    %961 = vmatprep.subr.bf16.mxu0 %v658
    %962 = vmatpush2.bf16.msra.mxu0 %v657
    %963 = vmatprep.subr.bf16.mxu0 %v654
    %964 = vmatpush2.bf16.msra.mxu0 %v653
    %965 = vmatprep.subr.bf16.mxu0 %v650
    %966 = vmatpush2.bf16.msra.mxu0 %v649
    %967 = vmatprep.subr.bf16.mxu0 %v646
    %968 = vmatpush2.bf16.msra.mxu0 %v645
    %969 = vmatprep.subr.bf16.mxu0 %v642
    %970 = vmatpush2.bf16.msra.mxu0 %v641
    %971 = vmatprep.subr.bf16.mxu0 %v638
    %972 = vmatpush2.bf16.msra.mxu0 %v637
    %973 = vmatprep.mubr.bf16.mxu0 %v212
    %974 = vmatmul.mubr.bf16.gmra.mxu0 %v211
    %v975 = vpop.f32.mrf.mxu0
    %v976 = vadd.f32 0.0, %v975
    %v977 = vpop.f32.mrf.mxu0
    %v978 = vadd.f32 0.0, %v977
    %v979 = vpop.f32.mrf.mxu0
    %v980 = vpop.f32.mrf.mxu0
    %981 = vdwg.mxu0
    %982 = vmatprep.subr.bf16.mxu0 %v698
    %983 = vmatpush1.bf16.msra.mxu0 %v697
    %984 = vmatprep.subr.bf16.mxu0 %v694
    %985 = vmatpush1.bf16.msra.mxu0 %v693
    %986 = vmatprep.subr.bf16.mxu0 %v690
    %987 = vmatpush1.bf16.msra.mxu0 %v689
    %988 = vmatprep.subr.bf16.mxu0 %v686
    %989 = vmatpush1.bf16.msra.mxu0 %v685
    %990 = vmatprep.subr.bf16.mxu0 %v682
    %991 = vmatpush1.bf16.msra.mxu0 %v681
    %992 = vmatprep.subr.bf16.mxu0 %v678
    %993 = vmatpush1.bf16.msra.mxu0 %v677
    %994 = vmatprep.subr.bf16.mxu0 %v674
    %995 = vmatpush1.bf16.msra.mxu0 %v673
    %996 = vmatprep.subr.bf16.mxu0 %v670
    %997 = vmatpush1.bf16.msra.mxu0 %v669
    %998 = vmatprep.subr.bf16.mxu0 %v730
    %999 = vmatpush2.bf16.msra.mxu0 %v729
    %1000 = vmatprep.subr.bf16.mxu0 %v726
    %1001 = vmatpush2.bf16.msra.mxu0 %v725
    %1002 = vmatprep.subr.bf16.mxu0 %v722
    %1003 = vmatpush2.bf16.msra.mxu0 %v721
    %1004 = vmatprep.subr.bf16.mxu0 %v718
    %1005 = vmatpush2.bf16.msra.mxu0 %v717
    %1006 = vmatprep.subr.bf16.mxu0 %v714
    %1007 = vmatpush2.bf16.msra.mxu0 %v713
    %1008 = vmatprep.subr.bf16.mxu0 %v710
    %1009 = vmatpush2.bf16.msra.mxu0 %v709
    %1010 = vmatprep.subr.bf16.mxu0 %v706
    %1011 = vmatpush2.bf16.msra.mxu0 %v705
    %1012 = vmatprep.subr.bf16.mxu0 %v702
    %1013 = vmatpush2.bf16.msra.mxu0 %v701
    %1014 = vmatprep.mubr.bf16.mxu0 %v214
    %1015 = vmatmul.mubr.bf16.gmra.mxu0 %v213
    %v1016 = vpop.f32.mrf.mxu0
    %v1017 = vadd.f32 %v976, %v1016
    %v1018 = vpop.f32.mrf.mxu0
    %v1019 = vadd.f32 %v978, %v1018
    %v1020 = vpop.f32.mrf.mxu0
    %v1021 = vpop.f32.mrf.mxu0
    %1022 = vdwg.mxu0
    %v1023 = vpack.c.bf16 %v935, %v935
    %v1024 = vpack.c.bf16 %v937, %v937
    %v1025 = vpack.c.bf16 %v1017, %v1017
    %v1026 = vpack.c.bf16 %v1019, %v1019
    %v1031 = vunpack.c.l.b16 %v1023
    %v1032 = vunpack.c.l.b16 %v1024
    %v1033 = vunpack.c.l.b16 %v1025
    %v1034 = vunpack.c.l.b16 %v1026
    %v1035 = vpack.c.b16 %v1032, %v1031
    %v1036 = vpack.c.b16 %v1034, %v1033
    %1039 = vst [vmem:[#allocation10] sm:$0xff] %v1035
    %1040 = vst [vmem:[#allocation10 + $0x8] sm:$0xff] %v1036
    %v1041 = vld [vmem:[#allocation7] sm:$0xff]
    %v1042 = vld [vmem:[#allocation7 + $0x8] sm:$0xff]
    %v1043 = vld [vmem:[#allocation7 + $0x10] sm:$0xff]
    %v1044 = vld [vmem:[#allocation7 + $0x18] sm:$0xff]
    %v1045 = vld [vmem:[#allocation7 + $0x20] sm:$0xff]
    %v1046 = vld [vmem:[#allocation7 + $0x28] sm:$0xff]
    %v1047 = vld [vmem:[#allocation7 + $0x30] sm:$0xff]
    %v1048 = vld [vmem:[#allocation7 + $0x38] sm:$0xff]
    %v1049 = vld [vmem:[#allocation7 + $0x40] sm:$0xff]
    %v1050 = vld [vmem:[#allocation7 + $0x48] sm:$0xff]
    %v1051 = vld [vmem:[#allocation7 + $0x50] sm:$0xff]
    %v1052 = vld [vmem:[#allocation7 + $0x58] sm:$0xff]
    %v1053 = vld [vmem:[#allocation7 + $0x60] sm:$0xff]
    %v1054 = vld [vmem:[#allocation7 + $0x68] sm:$0xff]
    %v1055 = vld [vmem:[#allocation7 + $0x70] sm:$0xff]
    %v1056 = vld [vmem:[#allocation7 + $0x78] sm:$0xff]
    %v1057 = vld [vmem:[#allocation7 + $0x80] sm:$0xff]
    %v1058 = vld [vmem:[#allocation7 + $0x88] sm:$0xff]
    %v1059 = vld [vmem:[#allocation7 + $0x90] sm:$0xff]
    %v1060 = vld [vmem:[#allocation7 + $0x98] sm:$0xff]
    %v1061 = vld [vmem:[#allocation7 + $0xa0] sm:$0xff]
    %v1062 = vld [vmem:[#allocation7 + $0xa8] sm:$0xff]
    %v1063 = vld [vmem:[#allocation7 + $0xb0] sm:$0xff]
    %v1064 = vld [vmem:[#allocation7 + $0xb8] sm:$0xff]
    %v1065 = vld [vmem:[#allocation7 + $0xc0] sm:$0xff]
    %v1066 = vld [vmem:[#allocation7 + $0xc8] sm:$0xff]
    %v1067 = vld [vmem:[#allocation7 + $0xd0] sm:$0xff]
    %v1068 = vld [vmem:[#allocation7 + $0xd8] sm:$0xff]
    %v1069 = vld [vmem:[#allocation7 + $0xe0] sm:$0xff]
    %v1070 = vld [vmem:[#allocation7 + $0xe8] sm:$0xff]
    %v1071 = vld [vmem:[#allocation7 + $0xf0] sm:$0xff]
    %v1072 = vld [vmem:[#allocation7 + $0xf8] sm:$0xff]
    %v1073 = vld [vmem:[#allocation7 + $0x100] sm:$0xff]
    %v1074 = vld [vmem:[#allocation7 + $0x108] sm:$0xff]
    %v1075 = vld [vmem:[#allocation7 + $0x110] sm:$0xff]
    %v1076 = vld [vmem:[#allocation7 + $0x118] sm:$0xff]
    %v1077 = vld [vmem:[#allocation7 + $0x120] sm:$0xff]
    %v1078 = vld [vmem:[#allocation7 + $0x128] sm:$0xff]
    %v1079 = vld [vmem:[#allocation7 + $0x130] sm:$0xff]
    %v1080 = vld [vmem:[#allocation7 + $0x138] sm:$0xff]
    %v1081 = vld [vmem:[#allocation7 + $0x140] sm:$0xff]
    %v1082 = vld [vmem:[#allocation7 + $0x148] sm:$0xff]
    %v1083 = vld [vmem:[#allocation7 + $0x150] sm:$0xff]
    %v1084 = vld [vmem:[#allocation7 + $0x158] sm:$0xff]
    %v1085 = vld [vmem:[#allocation7 + $0x160] sm:$0xff]
    %v1086 = vld [vmem:[#allocation7 + $0x168] sm:$0xff]
    %v1087 = vld [vmem:[#allocation7 + $0x170] sm:$0xff]
    %v1088 = vld [vmem:[#allocation7 + $0x178] sm:$0xff]
    %v1089 = vld [vmem:[#allocation7 + $0x180] sm:$0xff]
    %v1090 = vld [vmem:[#allocation7 + $0x188] sm:$0xff]
    %v1091 = vld [vmem:[#allocation7 + $0x190] sm:$0xff]
    %v1092 = vld [vmem:[#allocation7 + $0x198] sm:$0xff]
    %v1093 = vld [vmem:[#allocation7 + $0x1a0] sm:$0xff]
    %v1094 = vld [vmem:[#allocation7 + $0x1a8] sm:$0xff]
    %v1095 = vld [vmem:[#allocation7 + $0x1b0] sm:$0xff]
    %v1096 = vld [vmem:[#allocation7 + $0x1b8] sm:$0xff]
    %v1097 = vld [vmem:[#allocation7 + $0x1c0] sm:$0xff]
    %v1098 = vld [vmem:[#allocation7 + $0x1c8] sm:$0xff]
    %v1099 = vld [vmem:[#allocation7 + $0x1d0] sm:$0xff]
    %v1100 = vld [vmem:[#allocation7 + $0x1d8] sm:$0xff]
    %v1101 = vld [vmem:[#allocation7 + $0x1e0] sm:$0xff]
    %v1102 = vld [vmem:[#allocation7 + $0x1e8] sm:$0xff]
    %v1103 = vld [vmem:[#allocation7 + $0x1f0] sm:$0xff]
    %v1104 = vld [vmem:[#allocation7 + $0x1f8] sm:$0xff]
    %v1105 = vld [vmem:[#allocation7 + $0x200] sm:$0xff]
    %v1106 = vld [vmem:[#allocation7 + $0x208] sm:$0xff]
    %v1107 = vld [vmem:[#allocation7 + $0x210] sm:$0xff]
    %v1108 = vld [vmem:[#allocation7 + $0x218] sm:$0xff]
    %v1109 = vld [vmem:[#allocation7 + $0x220] sm:$0xff]
    %v1110 = vld [vmem:[#allocation7 + $0x228] sm:$0xff]
    %v1111 = vld [vmem:[#allocation7 + $0x230] sm:$0xff]
    %v1112 = vld [vmem:[#allocation7 + $0x238] sm:$0xff]
    %v1113 = vld [vmem:[#allocation7 + $0x240] sm:$0xff]
    %v1114 = vld [vmem:[#allocation7 + $0x248] sm:$0xff]
    %v1115 = vld [vmem:[#allocation7 + $0x250] sm:$0xff]
    %v1116 = vld [vmem:[#allocation7 + $0x258] sm:$0xff]
    %v1117 = vld [vmem:[#allocation7 + $0x260] sm:$0xff]
    %v1118 = vld [vmem:[#allocation7 + $0x268] sm:$0xff]
    %v1119 = vld [vmem:[#allocation7 + $0x270] sm:$0xff]
    %v1120 = vld [vmem:[#allocation7 + $0x278] sm:$0xff]
    %v1121 = vld [vmem:[#allocation7 + $0x280] sm:$0xff]
    %v1122 = vld [vmem:[#allocation7 + $0x288] sm:$0xff]
    %v1123 = vld [vmem:[#allocation7 + $0x290] sm:$0xff]
    %v1124 = vld [vmem:[#allocation7 + $0x298] sm:$0xff]
    %v1125 = vld [vmem:[#allocation7 + $0x2a0] sm:$0xff]
    %v1126 = vld [vmem:[#allocation7 + $0x2a8] sm:$0xff]
    %v1127 = vld [vmem:[#allocation7 + $0x2b0] sm:$0xff]
    %v1128 = vld [vmem:[#allocation7 + $0x2b8] sm:$0xff]
    %v1129 = vld [vmem:[#allocation7 + $0x2c0] sm:$0xff]
    %v1130 = vld [vmem:[#allocation7 + $0x2c8] sm:$0xff]
    %v1131 = vld [vmem:[#allocation7 + $0x2d0] sm:$0xff]
    %v1132 = vld [vmem:[#allocation7 + $0x2d8] sm:$0xff]
    %v1133 = vld [vmem:[#allocation7 + $0x2e0] sm:$0xff]
    %v1134 = vld [vmem:[#allocation7 + $0x2e8] sm:$0xff]
    %v1135 = vld [vmem:[#allocation7 + $0x2f0] sm:$0xff]
    %v1136 = vld [vmem:[#allocation7 + $0x2f8] sm:$0xff]
    %v1137 = vld [vmem:[#allocation7 + $0x300] sm:$0xff]
    %v1138 = vld [vmem:[#allocation7 + $0x308] sm:$0xff]
    %v1139 = vld [vmem:[#allocation7 + $0x310] sm:$0xff]
    %v1140 = vld [vmem:[#allocation7 + $0x318] sm:$0xff]
    %v1141 = vld [vmem:[#allocation7 + $0x320] sm:$0xff]
    %v1142 = vld [vmem:[#allocation7 + $0x328] sm:$0xff]
    %v1143 = vld [vmem:[#allocation7 + $0x330] sm:$0xff]
    %v1144 = vld [vmem:[#allocation7 + $0x338] sm:$0xff]
    %v1145 = vld [vmem:[#allocation7 + $0x340] sm:$0xff]
    %v1146 = vld [vmem:[#allocation7 + $0x348] sm:$0xff]
    %v1147 = vld [vmem:[#allocation7 + $0x350] sm:$0xff]
    %v1148 = vld [vmem:[#allocation7 + $0x358] sm:$0xff]
    %v1149 = vld [vmem:[#allocation7 + $0x360] sm:$0xff]
    %v1150 = vld [vmem:[#allocation7 + $0x368] sm:$0xff]
    %v1151 = vld [vmem:[#allocation7 + $0x370] sm:$0xff]
    %v1152 = vld [vmem:[#allocation7 + $0x378] sm:$0xff]
    %v1153 = vld [vmem:[#allocation7 + $0x380] sm:$0xff]
    %v1154 = vld [vmem:[#allocation7 + $0x388] sm:$0xff]
    %v1155 = vld [vmem:[#allocation7 + $0x390] sm:$0xff]
    %v1156 = vld [vmem:[#allocation7 + $0x398] sm:$0xff]
    %v1157 = vld [vmem:[#allocation7 + $0x3a0] sm:$0xff]
    %v1158 = vld [vmem:[#allocation7 + $0x3a8] sm:$0xff]
    %v1159 = vld [vmem:[#allocation7 + $0x3b0] sm:$0xff]
    %v1160 = vld [vmem:[#allocation7 + $0x3b8] sm:$0xff]
    %v1161 = vld [vmem:[#allocation7 + $0x3c0] sm:$0xff]
    %v1162 = vld [vmem:[#allocation7 + $0x3c8] sm:$0xff]
    %v1163 = vld [vmem:[#allocation7 + $0x3d0] sm:$0xff]
    %v1164 = vld [vmem:[#allocation7 + $0x3d8] sm:$0xff]
    %v1165 = vld [vmem:[#allocation7 + $0x3e0] sm:$0xff]
    %v1166 = vld [vmem:[#allocation7 + $0x3e8] sm:$0xff]
    %v1167 = vld [vmem:[#allocation7 + $0x3f0] sm:$0xff]
    %v1168 = vld [vmem:[#allocation7 + $0x3f8] sm:$0xff]
    %v1297 = vunpack.c.l.b16 %v1041
    %v1298 = vunpack.c.h.b16 %v1041
    %v1299 = vunpack.c.l.b16 %v1042
    %v1300 = vunpack.c.h.b16 %v1042
    %v1301 = vunpack.c.l.b16 %v1043
    %v1302 = vunpack.c.h.b16 %v1043
    %v1303 = vunpack.c.l.b16 %v1044
    %v1304 = vunpack.c.h.b16 %v1044
    %v1305 = vunpack.c.l.b16 %v1045
    %v1306 = vunpack.c.h.b16 %v1045
    %v1307 = vunpack.c.l.b16 %v1046
    %v1308 = vunpack.c.h.b16 %v1046
    %v1309 = vunpack.c.l.b16 %v1047
    %v1310 = vunpack.c.h.b16 %v1047
    %v1311 = vunpack.c.l.b16 %v1048
    %v1312 = vunpack.c.h.b16 %v1048
    %v1313 = vunpack.c.l.b16 %v1049
    %v1314 = vunpack.c.h.b16 %v1049
    %v1315 = vunpack.c.l.b16 %v1050
    %v1316 = vunpack.c.h.b16 %v1050
    %v1317 = vunpack.c.l.b16 %v1051
    %v1318 = vunpack.c.h.b16 %v1051
    %v1319 = vunpack.c.l.b16 %v1052
    %v1320 = vunpack.c.h.b16 %v1052
    %v1321 = vunpack.c.l.b16 %v1053
    %v1322 = vunpack.c.h.b16 %v1053
    %v1323 = vunpack.c.l.b16 %v1054
    %v1324 = vunpack.c.h.b16 %v1054
    %v1325 = vunpack.c.l.b16 %v1055
    %v1326 = vunpack.c.h.b16 %v1055
    %v1327 = vunpack.c.l.b16 %v1056
    %v1328 = vunpack.c.h.b16 %v1056
    %v1329 = vunpack.c.l.b16 %v1057
    %v1330 = vunpack.c.h.b16 %v1057
    %v1331 = vunpack.c.l.b16 %v1058
    %v1332 = vunpack.c.h.b16 %v1058
    %v1333 = vunpack.c.l.b16 %v1059
    %v1334 = vunpack.c.h.b16 %v1059
    %v1335 = vunpack.c.l.b16 %v1060
    %v1336 = vunpack.c.h.b16 %v1060
    %v1337 = vunpack.c.l.b16 %v1061
    %v1338 = vunpack.c.h.b16 %v1061
    %v1339 = vunpack.c.l.b16 %v1062
    %v1340 = vunpack.c.h.b16 %v1062
    %v1341 = vunpack.c.l.b16 %v1063
    %v1342 = vunpack.c.h.b16 %v1063
    %v1343 = vunpack.c.l.b16 %v1064
    %v1344 = vunpack.c.h.b16 %v1064
    %v1345 = vunpack.c.l.b16 %v1065
    %v1346 = vunpack.c.h.b16 %v1065
    %v1347 = vunpack.c.l.b16 %v1066
    %v1348 = vunpack.c.h.b16 %v1066
    %v1349 = vunpack.c.l.b16 %v1067
    %v1350 = vunpack.c.h.b16 %v1067
    %v1351 = vunpack.c.l.b16 %v1068
    %v1352 = vunpack.c.h.b16 %v1068
    %v1353 = vunpack.c.l.b16 %v1069
    %v1354 = vunpack.c.h.b16 %v1069
    %v1355 = vunpack.c.l.b16 %v1070
    %v1356 = vunpack.c.h.b16 %v1070
    %v1357 = vunpack.c.l.b16 %v1071
    %v1358 = vunpack.c.h.b16 %v1071
    %v1359 = vunpack.c.l.b16 %v1072
    %v1360 = vunpack.c.h.b16 %v1072
    %v1361 = vunpack.c.l.b16 %v1073
    %v1362 = vunpack.c.h.b16 %v1073
    %v1363 = vunpack.c.l.b16 %v1074
    %v1364 = vunpack.c.h.b16 %v1074
    %v1365 = vunpack.c.l.b16 %v1075
    %v1366 = vunpack.c.h.b16 %v1075
    %v1367 = vunpack.c.l.b16 %v1076
    %v1368 = vunpack.c.h.b16 %v1076
    %v1369 = vunpack.c.l.b16 %v1077
    %v1370 = vunpack.c.h.b16 %v1077
    %v1371 = vunpack.c.l.b16 %v1078
    %v1372 = vunpack.c.h.b16 %v1078
    %v1373 = vunpack.c.l.b16 %v1079
    %v1374 = vunpack.c.h.b16 %v1079
    %v1375 = vunpack.c.l.b16 %v1080
    %v1376 = vunpack.c.h.b16 %v1080
    %v1377 = vunpack.c.l.b16 %v1081
    %v1378 = vunpack.c.h.b16 %v1081
    %v1379 = vunpack.c.l.b16 %v1082
    %v1380 = vunpack.c.h.b16 %v1082
    %v1381 = vunpack.c.l.b16 %v1083
    %v1382 = vunpack.c.h.b16 %v1083
    %v1383 = vunpack.c.l.b16 %v1084
    %v1384 = vunpack.c.h.b16 %v1084
    %v1385 = vunpack.c.l.b16 %v1085
    %v1386 = vunpack.c.h.b16 %v1085
    %v1387 = vunpack.c.l.b16 %v1086
    %v1388 = vunpack.c.h.b16 %v1086
    %v1389 = vunpack.c.l.b16 %v1087
    %v1390 = vunpack.c.h.b16 %v1087
    %v1391 = vunpack.c.l.b16 %v1088
    %v1392 = vunpack.c.h.b16 %v1088
    %v1393 = vunpack.c.l.b16 %v1089
    %v1394 = vunpack.c.h.b16 %v1089
    %v1395 = vunpack.c.l.b16 %v1090
    %v1396 = vunpack.c.h.b16 %v1090
    %v1397 = vunpack.c.l.b16 %v1091
    %v1398 = vunpack.c.h.b16 %v1091
    %v1399 = vunpack.c.l.b16 %v1092
    %v1400 = vunpack.c.h.b16 %v1092
    %v1401 = vunpack.c.l.b16 %v1093
    %v1402 = vunpack.c.h.b16 %v1093
    %v1403 = vunpack.c.l.b16 %v1094
    %v1404 = vunpack.c.h.b16 %v1094
    %v1405 = vunpack.c.l.b16 %v1095
    %v1406 = vunpack.c.h.b16 %v1095
    %v1407 = vunpack.c.l.b16 %v1096
    %v1408 = vunpack.c.h.b16 %v1096
    %v1409 = vunpack.c.l.b16 %v1097
    %v1410 = vunpack.c.h.b16 %v1097
    %v1411 = vunpack.c.l.b16 %v1098
    %v1412 = vunpack.c.h.b16 %v1098
    %v1413 = vunpack.c.l.b16 %v1099
    %v1414 = vunpack.c.h.b16 %v1099
    %v1415 = vunpack.c.l.b16 %v1100
    %v1416 = vunpack.c.h.b16 %v1100
    %v1417 = vunpack.c.l.b16 %v1101
    %v1418 = vunpack.c.h.b16 %v1101
    %v1419 = vunpack.c.l.b16 %v1102
    %v1420 = vunpack.c.h.b16 %v1102
    %v1421 = vunpack.c.l.b16 %v1103
    %v1422 = vunpack.c.h.b16 %v1103
    %v1423 = vunpack.c.l.b16 %v1104
    %v1424 = vunpack.c.h.b16 %v1104
    %v1425 = vunpack.c.l.b16 %v1105
    %v1426 = vunpack.c.h.b16 %v1105
    %v1427 = vunpack.c.l.b16 %v1106
    %v1428 = vunpack.c.h.b16 %v1106
    %v1429 = vunpack.c.l.b16 %v1107
    %v1430 = vunpack.c.h.b16 %v1107
    %v1431 = vunpack.c.l.b16 %v1108
    %v1432 = vunpack.c.h.b16 %v1108
    %v1433 = vunpack.c.l.b16 %v1109
    %v1434 = vunpack.c.h.b16 %v1109
    %v1435 = vunpack.c.l.b16 %v1110
    %v1436 = vunpack.c.h.b16 %v1110
    %v1437 = vunpack.c.l.b16 %v1111
    %v1438 = vunpack.c.h.b16 %v1111
    %v1439 = vunpack.c.l.b16 %v1112
    %v1440 = vunpack.c.h.b16 %v1112
    %v1441 = vunpack.c.l.b16 %v1113
    %v1442 = vunpack.c.h.b16 %v1113
    %v1443 = vunpack.c.l.b16 %v1114
    %v1444 = vunpack.c.h.b16 %v1114
    %v1445 = vunpack.c.l.b16 %v1115
    %v1446 = vunpack.c.h.b16 %v1115
    %v1447 = vunpack.c.l.b16 %v1116
    %v1448 = vunpack.c.h.b16 %v1116
    %v1449 = vunpack.c.l.b16 %v1117
    %v1450 = vunpack.c.h.b16 %v1117
    %v1451 = vunpack.c.l.b16 %v1118
    %v1452 = vunpack.c.h.b16 %v1118
    %v1453 = vunpack.c.l.b16 %v1119
    %v1454 = vunpack.c.h.b16 %v1119
    %v1455 = vunpack.c.l.b16 %v1120
    %v1456 = vunpack.c.h.b16 %v1120
    %v1457 = vunpack.c.l.b16 %v1121
    %v1458 = vunpack.c.h.b16 %v1121
    %v1459 = vunpack.c.l.b16 %v1122
    %v1460 = vunpack.c.h.b16 %v1122
    %v1461 = vunpack.c.l.b16 %v1123
    %v1462 = vunpack.c.h.b16 %v1123
    %v1463 = vunpack.c.l.b16 %v1124
    %v1464 = vunpack.c.h.b16 %v1124
    %v1465 = vunpack.c.l.b16 %v1125
    %v1466 = vunpack.c.h.b16 %v1125
    %v1467 = vunpack.c.l.b16 %v1126
    %v1468 = vunpack.c.h.b16 %v1126
    %v1469 = vunpack.c.l.b16 %v1127
    %v1470 = vunpack.c.h.b16 %v1127
    %v1471 = vunpack.c.l.b16 %v1128
    %v1472 = vunpack.c.h.b16 %v1128
    %v1473 = vunpack.c.l.b16 %v1129
    %v1474 = vunpack.c.h.b16 %v1129
    %v1475 = vunpack.c.l.b16 %v1130
    %v1476 = vunpack.c.h.b16 %v1130
    %v1477 = vunpack.c.l.b16 %v1131
    %v1478 = vunpack.c.h.b16 %v1131
    %v1479 = vunpack.c.l.b16 %v1132
    %v1480 = vunpack.c.h.b16 %v1132
    %v1481 = vunpack.c.l.b16 %v1133
    %v1482 = vunpack.c.h.b16 %v1133
    %v1483 = vunpack.c.l.b16 %v1134
    %v1484 = vunpack.c.h.b16 %v1134
    %v1485 = vunpack.c.l.b16 %v1135
    %v1486 = vunpack.c.h.b16 %v1135
    %v1487 = vunpack.c.l.b16 %v1136
    %v1488 = vunpack.c.h.b16 %v1136
    %v1489 = vunpack.c.l.b16 %v1137
    %v1490 = vunpack.c.h.b16 %v1137
    %v1491 = vunpack.c.l.b16 %v1138
    %v1492 = vunpack.c.h.b16 %v1138
    %v1493 = vunpack.c.l.b16 %v1139
    %v1494 = vunpack.c.h.b16 %v1139
    %v1495 = vunpack.c.l.b16 %v1140
    %v1496 = vunpack.c.h.b16 %v1140
    %v1497 = vunpack.c.l.b16 %v1141
    %v1498 = vunpack.c.h.b16 %v1141
    %v1499 = vunpack.c.l.b16 %v1142
    %v1500 = vunpack.c.h.b16 %v1142
    %v1501 = vunpack.c.l.b16 %v1143
    %v1502 = vunpack.c.h.b16 %v1143
    %v1503 = vunpack.c.l.b16 %v1144
    %v1504 = vunpack.c.h.b16 %v1144
    %v1505 = vunpack.c.l.b16 %v1145
    %v1506 = vunpack.c.h.b16 %v1145
    %v1507 = vunpack.c.l.b16 %v1146
    %v1508 = vunpack.c.h.b16 %v1146
    %v1509 = vunpack.c.l.b16 %v1147
    %v1510 = vunpack.c.h.b16 %v1147
    %v1511 = vunpack.c.l.b16 %v1148
    %v1512 = vunpack.c.h.b16 %v1148
    %v1513 = vunpack.c.l.b16 %v1149
    %v1514 = vunpack.c.h.b16 %v1149
    %v1515 = vunpack.c.l.b16 %v1150
    %v1516 = vunpack.c.h.b16 %v1150
    %v1517 = vunpack.c.l.b16 %v1151
    %v1518 = vunpack.c.h.b16 %v1151
    %v1519 = vunpack.c.l.b16 %v1152
    %v1520 = vunpack.c.h.b16 %v1152
    %v1521 = vunpack.c.l.b16 %v1153
    %v1522 = vunpack.c.h.b16 %v1153
    %v1523 = vunpack.c.l.b16 %v1154
    %v1524 = vunpack.c.h.b16 %v1154
    %v1525 = vunpack.c.l.b16 %v1155
    %v1526 = vunpack.c.h.b16 %v1155
    %v1527 = vunpack.c.l.b16 %v1156
    %v1528 = vunpack.c.h.b16 %v1156
    %v1529 = vunpack.c.l.b16 %v1157
    %v1530 = vunpack.c.h.b16 %v1157
    %v1531 = vunpack.c.l.b16 %v1158
    %v1532 = vunpack.c.h.b16 %v1158
    %v1533 = vunpack.c.l.b16 %v1159
    %v1534 = vunpack.c.h.b16 %v1159
    %v1535 = vunpack.c.l.b16 %v1160
    %v1536 = vunpack.c.h.b16 %v1160
    %v1537 = vunpack.c.l.b16 %v1161
    %v1538 = vunpack.c.h.b16 %v1161
    %v1539 = vunpack.c.l.b16 %v1162
    %v1540 = vunpack.c.h.b16 %v1162
    %v1541 = vunpack.c.l.b16 %v1163
    %v1542 = vunpack.c.h.b16 %v1163
    %v1543 = vunpack.c.l.b16 %v1164
    %v1544 = vunpack.c.h.b16 %v1164
    %v1545 = vunpack.c.l.b16 %v1165
    %v1546 = vunpack.c.h.b16 %v1165
    %v1547 = vunpack.c.l.b16 %v1166
    %v1548 = vunpack.c.h.b16 %v1166
    %v1549 = vunpack.c.l.b16 %v1167
    %v1550 = vunpack.c.h.b16 %v1167
    %v1551 = vunpack.c.l.b16 %v1168
    %v1552 = vunpack.c.h.b16 %v1168
    %v1553 = vpack.c.b16 %v1301, %v1297
    %v1554 = vpack.c.b16 %v1302, %v1298
    %v1555 = vpack.c.b16 %v1303, %v1299
    %v1556 = vpack.c.b16 %v1304, %v1300
    %v1557 = vpack.c.b16 %v1309, %v1305
    %v1558 = vpack.c.b16 %v1310, %v1306
    %v1559 = vpack.c.b16 %v1311, %v1307
    %v1560 = vpack.c.b16 %v1312, %v1308
    %v1561 = vpack.c.b16 %v1317, %v1313
    %v1562 = vpack.c.b16 %v1318, %v1314
    %v1563 = vpack.c.b16 %v1319, %v1315
    %v1564 = vpack.c.b16 %v1320, %v1316
    %v1565 = vpack.c.b16 %v1325, %v1321
    %v1566 = vpack.c.b16 %v1326, %v1322
    %v1567 = vpack.c.b16 %v1327, %v1323
    %v1568 = vpack.c.b16 %v1328, %v1324
    %v1569 = vpack.c.b16 %v1333, %v1329
    %v1570 = vpack.c.b16 %v1334, %v1330
    %v1571 = vpack.c.b16 %v1335, %v1331
    %v1572 = vpack.c.b16 %v1336, %v1332
    %v1573 = vpack.c.b16 %v1341, %v1337
    %v1574 = vpack.c.b16 %v1342, %v1338
    %v1575 = vpack.c.b16 %v1343, %v1339
    %v1576 = vpack.c.b16 %v1344, %v1340
    %v1577 = vpack.c.b16 %v1349, %v1345
    %v1578 = vpack.c.b16 %v1350, %v1346
    %v1579 = vpack.c.b16 %v1351, %v1347
    %v1580 = vpack.c.b16 %v1352, %v1348
    %v1581 = vpack.c.b16 %v1357, %v1353
    %v1582 = vpack.c.b16 %v1358, %v1354
    %v1583 = vpack.c.b16 %v1359, %v1355
    %v1584 = vpack.c.b16 %v1360, %v1356
    %v1585 = vpack.c.b16 %v1365, %v1361
    %v1586 = vpack.c.b16 %v1366, %v1362
    %v1587 = vpack.c.b16 %v1367, %v1363
    %v1588 = vpack.c.b16 %v1368, %v1364
    %v1589 = vpack.c.b16 %v1373, %v1369
    %v1590 = vpack.c.b16 %v1374, %v1370
    %v1591 = vpack.c.b16 %v1375, %v1371
    %v1592 = vpack.c.b16 %v1376, %v1372
    %v1593 = vpack.c.b16 %v1381, %v1377
    %v1594 = vpack.c.b16 %v1382, %v1378
    %v1595 = vpack.c.b16 %v1383, %v1379
    %v1596 = vpack.c.b16 %v1384, %v1380
    %v1597 = vpack.c.b16 %v1389, %v1385
    %v1598 = vpack.c.b16 %v1390, %v1386
    %v1599 = vpack.c.b16 %v1391, %v1387
    %v1600 = vpack.c.b16 %v1392, %v1388
    %v1601 = vpack.c.b16 %v1397, %v1393
    %v1602 = vpack.c.b16 %v1398, %v1394
    %v1603 = vpack.c.b16 %v1399, %v1395
    %v1604 = vpack.c.b16 %v1400, %v1396
    %v1605 = vpack.c.b16 %v1405, %v1401
    %v1606 = vpack.c.b16 %v1406, %v1402
    %v1607 = vpack.c.b16 %v1407, %v1403
    %v1608 = vpack.c.b16 %v1408, %v1404
    %v1609 = vpack.c.b16 %v1413, %v1409
    %v1610 = vpack.c.b16 %v1414, %v1410
    %v1611 = vpack.c.b16 %v1415, %v1411
    %v1612 = vpack.c.b16 %v1416, %v1412
    %v1613 = vpack.c.b16 %v1421, %v1417
    %v1614 = vpack.c.b16 %v1422, %v1418
    %v1615 = vpack.c.b16 %v1423, %v1419
    %v1616 = vpack.c.b16 %v1424, %v1420
    %v1617 = vpack.c.b16 %v1429, %v1425
    %v1618 = vpack.c.b16 %v1430, %v1426
    %v1619 = vpack.c.b16 %v1431, %v1427
    %v1620 = vpack.c.b16 %v1432, %v1428
    %v1621 = vpack.c.b16 %v1437, %v1433
    %v1622 = vpack.c.b16 %v1438, %v1434
    %v1623 = vpack.c.b16 %v1439, %v1435
    %v1624 = vpack.c.b16 %v1440, %v1436
    %v1625 = vpack.c.b16 %v1445, %v1441
    %v1626 = vpack.c.b16 %v1446, %v1442
    %v1627 = vpack.c.b16 %v1447, %v1443
    %v1628 = vpack.c.b16 %v1448, %v1444
    %v1629 = vpack.c.b16 %v1453, %v1449
    %v1630 = vpack.c.b16 %v1454, %v1450
    %v1631 = vpack.c.b16 %v1455, %v1451
    %v1632 = vpack.c.b16 %v1456, %v1452
    %v1633 = vpack.c.b16 %v1461, %v1457
    %v1634 = vpack.c.b16 %v1462, %v1458
    %v1635 = vpack.c.b16 %v1463, %v1459
    %v1636 = vpack.c.b16 %v1464, %v1460
    %v1637 = vpack.c.b16 %v1469, %v1465
    %v1638 = vpack.c.b16 %v1470, %v1466
    %v1639 = vpack.c.b16 %v1471, %v1467
    %v1640 = vpack.c.b16 %v1472, %v1468
    %v1641 = vpack.c.b16 %v1477, %v1473
    %v1642 = vpack.c.b16 %v1478, %v1474
    %v1643 = vpack.c.b16 %v1479, %v1475
    %v1644 = vpack.c.b16 %v1480, %v1476
    %v1645 = vpack.c.b16 %v1485, %v1481
    %v1646 = vpack.c.b16 %v1486, %v1482
    %v1647 = vpack.c.b16 %v1487, %v1483
    %v1648 = vpack.c.b16 %v1488, %v1484
    %v1649 = vpack.c.b16 %v1493, %v1489
    %v1650 = vpack.c.b16 %v1494, %v1490
    %v1651 = vpack.c.b16 %v1495, %v1491
    %v1652 = vpack.c.b16 %v1496, %v1492
    %v1653 = vpack.c.b16 %v1501, %v1497
    %v1654 = vpack.c.b16 %v1502, %v1498
    %v1655 = vpack.c.b16 %v1503, %v1499
    %v1656 = vpack.c.b16 %v1504, %v1500
    %v1657 = vpack.c.b16 %v1509, %v1505
    %v1658 = vpack.c.b16 %v1510, %v1506
    %v1659 = vpack.c.b16 %v1511, %v1507
    %v1660 = vpack.c.b16 %v1512, %v1508
    %v1661 = vpack.c.b16 %v1517, %v1513
    %v1662 = vpack.c.b16 %v1518, %v1514
    %v1663 = vpack.c.b16 %v1519, %v1515
    %v1664 = vpack.c.b16 %v1520, %v1516
    %v1665 = vpack.c.b16 %v1525, %v1521
    %v1666 = vpack.c.b16 %v1526, %v1522
    %v1667 = vpack.c.b16 %v1527, %v1523
    %v1668 = vpack.c.b16 %v1528, %v1524
    %v1669 = vpack.c.b16 %v1533, %v1529
    %v1670 = vpack.c.b16 %v1534, %v1530
    %v1671 = vpack.c.b16 %v1535, %v1531
    %v1672 = vpack.c.b16 %v1536, %v1532
    %v1673 = vpack.c.b16 %v1541, %v1537
    %v1674 = vpack.c.b16 %v1542, %v1538
    %v1675 = vpack.c.b16 %v1543, %v1539
    %v1676 = vpack.c.b16 %v1544, %v1540
    %v1677 = vpack.c.b16 %v1549, %v1545
    %v1678 = vpack.c.b16 %v1550, %v1546
    %v1679 = vpack.c.b16 %v1551, %v1547
    %v1680 = vpack.c.b16 %v1552, %v1548
    %1809 = vmatprep.subr.bf16.mxu0 %v1582
    %1810 = vmatpush1.bf16.msra.mxu0 %v1581
    %1811 = vmatprep.subr.bf16.mxu0 %v1578
    %1812 = vmatpush1.bf16.msra.mxu0 %v1577
    %1813 = vmatprep.subr.bf16.mxu0 %v1574
    %1814 = vmatpush1.bf16.msra.mxu0 %v1573
    %1815 = vmatprep.subr.bf16.mxu0 %v1570
    %1816 = vmatpush1.bf16.msra.mxu0 %v1569
    %1817 = vmatprep.subr.bf16.mxu0 %v1566
    %1818 = vmatpush1.bf16.msra.mxu0 %v1565
    %1819 = vmatprep.subr.bf16.mxu0 %v1562
    %1820 = vmatpush1.bf16.msra.mxu0 %v1561
    %1821 = vmatprep.subr.bf16.mxu0 %v1558
    %1822 = vmatpush1.bf16.msra.mxu0 %v1557
    %1823 = vmatprep.subr.bf16.mxu0 %v1554
    %1824 = vmatpush1.bf16.msra.mxu0 %v1553
    %1825 = vmatprep.subr.bf16.mxu0 %v1614
    %1826 = vmatpush2.bf16.msra.mxu0 %v1613
    %1827 = vmatprep.subr.bf16.mxu0 %v1610
    %1828 = vmatpush2.bf16.msra.mxu0 %v1609
    %1829 = vmatprep.subr.bf16.mxu0 %v1606
    %1830 = vmatpush2.bf16.msra.mxu0 %v1605
    %1831 = vmatprep.subr.bf16.mxu0 %v1602
    %1832 = vmatpush2.bf16.msra.mxu0 %v1601
    %1833 = vmatprep.subr.bf16.mxu0 %v1598
    %1834 = vmatpush2.bf16.msra.mxu0 %v1597
    %1835 = vmatprep.subr.bf16.mxu0 %v1594
    %1836 = vmatpush2.bf16.msra.mxu0 %v1593
    %1837 = vmatprep.subr.bf16.mxu0 %v1590
    %1838 = vmatpush2.bf16.msra.mxu0 %v1589
    %1839 = vmatprep.subr.bf16.mxu0 %v1586
    %1840 = vmatpush2.bf16.msra.mxu0 %v1585
    %1841 = vmatprep.mubr.bf16.mxu0 %v212
    %1842 = vmatmul.mubr.bf16.gmra.mxu0 %v211
    %v1843 = vpop.f32.mrf.mxu0
    %v1844 = vadd.f32 0.0, %v1843
    %v1845 = vpop.f32.mrf.mxu0
    %v1846 = vadd.f32 0.0, %v1845
    %v1847 = vpop.f32.mrf.mxu0
    %v1848 = vpop.f32.mrf.mxu0
    %1849 = vdwg.mxu0
    %1850 = vmatprep.subr.bf16.mxu0 %v1646
    %1851 = vmatpush1.bf16.msra.mxu0 %v1645
    %1852 = vmatprep.subr.bf16.mxu0 %v1642
    %1853 = vmatpush1.bf16.msra.mxu0 %v1641
    %1854 = vmatprep.subr.bf16.mxu0 %v1638
    %1855 = vmatpush1.bf16.msra.mxu0 %v1637
    %1856 = vmatprep.subr.bf16.mxu0 %v1634
    %1857 = vmatpush1.bf16.msra.mxu0 %v1633
    %1858 = vmatprep.subr.bf16.mxu0 %v1630
    %1859 = vmatpush1.bf16.msra.mxu0 %v1629
    %1860 = vmatprep.subr.bf16.mxu0 %v1626
    %1861 = vmatpush1.bf16.msra.mxu0 %v1625
    %1862 = vmatprep.subr.bf16.mxu0 %v1622
    %1863 = vmatpush1.bf16.msra.mxu0 %v1621
    %1864 = vmatprep.subr.bf16.mxu0 %v1618
    %1865 = vmatpush1.bf16.msra.mxu0 %v1617
    %1866 = vmatprep.subr.bf16.mxu0 %v1678
    %1867 = vmatpush2.bf16.msra.mxu0 %v1677
    %1868 = vmatprep.subr.bf16.mxu0 %v1674
    %1869 = vmatpush2.bf16.msra.mxu0 %v1673
    %1870 = vmatprep.subr.bf16.mxu0 %v1670
    %1871 = vmatpush2.bf16.msra.mxu0 %v1669
    %1872 = vmatprep.subr.bf16.mxu0 %v1666
    %1873 = vmatpush2.bf16.msra.mxu0 %v1665
    %1874 = vmatprep.subr.bf16.mxu0 %v1662
    %1875 = vmatpush2.bf16.msra.mxu0 %v1661
    %1876 = vmatprep.subr.bf16.mxu0 %v1658
    %1877 = vmatpush2.bf16.msra.mxu0 %v1657
    %1878 = vmatprep.subr.bf16.mxu0 %v1654
    %1879 = vmatpush2.bf16.msra.mxu0 %v1653
    %1880 = vmatprep.subr.bf16.mxu0 %v1650
    %1881 = vmatpush2.bf16.msra.mxu0 %v1649
    %1882 = vmatprep.mubr.bf16.mxu0 %v214
    %1883 = vmatmul.mubr.bf16.gmra.mxu0 %v213
    %v1884 = vpop.f32.mrf.mxu0
    %v1885 = vadd.f32 %v1844, %v1884
    %v1886 = vpop.f32.mrf.mxu0
    %v1887 = vadd.f32 %v1846, %v1886
    %v1888 = vpop.f32.mrf.mxu0
    %v1889 = vpop.f32.mrf.mxu0
    %1890 = vdwg.mxu0
    %1891 = vmatprep.subr.bf16.mxu0 %v1584
    %1892 = vmatpush1.bf16.msra.mxu0 %v1583
    %1893 = vmatprep.subr.bf16.mxu0 %v1580
    %1894 = vmatpush1.bf16.msra.mxu0 %v1579
    %1895 = vmatprep.subr.bf16.mxu0 %v1576
    %1896 = vmatpush1.bf16.msra.mxu0 %v1575
    %1897 = vmatprep.subr.bf16.mxu0 %v1572
    %1898 = vmatpush1.bf16.msra.mxu0 %v1571
    %1899 = vmatprep.subr.bf16.mxu0 %v1568
    %1900 = vmatpush1.bf16.msra.mxu0 %v1567
    %1901 = vmatprep.subr.bf16.mxu0 %v1564
    %1902 = vmatpush1.bf16.msra.mxu0 %v1563
    %1903 = vmatprep.subr.bf16.mxu0 %v1560
    %1904 = vmatpush1.bf16.msra.mxu0 %v1559
    %1905 = vmatprep.subr.bf16.mxu0 %v1556
    %1906 = vmatpush1.bf16.msra.mxu0 %v1555
    %1907 = vmatprep.subr.bf16.mxu0 %v1616
    %1908 = vmatpush2.bf16.msra.mxu0 %v1615
    %1909 = vmatprep.subr.bf16.mxu0 %v1612
    %1910 = vmatpush2.bf16.msra.mxu0 %v1611
    %1911 = vmatprep.subr.bf16.mxu0 %v1608
    %1912 = vmatpush2.bf16.msra.mxu0 %v1607
    %1913 = vmatprep.subr.bf16.mxu0 %v1604
    %1914 = vmatpush2.bf16.msra.mxu0 %v1603
    %1915 = vmatprep.subr.bf16.mxu0 %v1600
    %1916 = vmatpush2.bf16.msra.mxu0 %v1599
    %1917 = vmatprep.subr.bf16.mxu0 %v1596
    %1918 = vmatpush2.bf16.msra.mxu0 %v1595
    %1919 = vmatprep.subr.bf16.mxu0 %v1592
    %1920 = vmatpush2.bf16.msra.mxu0 %v1591
    %1921 = vmatprep.subr.bf16.mxu0 %v1588
    %1922 = vmatpush2.bf16.msra.mxu0 %v1587
    %1923 = vmatprep.mubr.bf16.mxu0 %v212
    %1924 = vmatmul.mubr.bf16.gmra.mxu0 %v211
    %v1925 = vpop.f32.mrf.mxu0
    %v1926 = vadd.f32 0.0, %v1925
    %v1927 = vpop.f32.mrf.mxu0
    %v1928 = vadd.f32 0.0, %v1927
    %v1929 = vpop.f32.mrf.mxu0
    %v1930 = vpop.f32.mrf.mxu0
    %1931 = vdwg.mxu0
    %1932 = vmatprep.subr.bf16.mxu0 %v1648
    %1933 = vmatpush1.bf16.msra.mxu0 %v1647
    %1934 = vmatprep.subr.bf16.mxu0 %v1644
    %1935 = vmatpush1.bf16.msra.mxu0 %v1643
    %1936 = vmatprep.subr.bf16.mxu0 %v1640
    %1937 = vmatpush1.bf16.msra.mxu0 %v1639
    %1938 = vmatprep.subr.bf16.mxu0 %v1636
    %1939 = vmatpush1.bf16.msra.mxu0 %v1635
    %1940 = vmatprep.subr.bf16.mxu0 %v1632
    %1941 = vmatpush1.bf16.msra.mxu0 %v1631
    %1942 = vmatprep.subr.bf16.mxu0 %v1628
    %1943 = vmatpush1.bf16.msra.mxu0 %v1627
    %1944 = vmatprep.subr.bf16.mxu0 %v1624
    %1945 = vmatpush1.bf16.msra.mxu0 %v1623
    %1946 = vmatprep.subr.bf16.mxu0 %v1620
    %1947 = vmatpush1.bf16.msra.mxu0 %v1619
    %1948 = vmatprep.subr.bf16.mxu0 %v1680
    %1949 = vmatpush2.bf16.msra.mxu0 %v1679
    %1950 = vmatprep.subr.bf16.mxu0 %v1676
    %1951 = vmatpush2.bf16.msra.mxu0 %v1675
    %1952 = vmatprep.subr.bf16.mxu0 %v1672
    %1953 = vmatpush2.bf16.msra.mxu0 %v1671
    %1954 = vmatprep.subr.bf16.mxu0 %v1668
    %1955 = vmatpush2.bf16.msra.mxu0 %v1667
    %1956 = vmatprep.subr.bf16.mxu0 %v1664
    %1957 = vmatpush2.bf16.msra.mxu0 %v1663
    %1958 = vmatprep.subr.bf16.mxu0 %v1660
    %1959 = vmatpush2.bf16.msra.mxu0 %v1659
    %1960 = vmatprep.subr.bf16.mxu0 %v1656
    %1961 = vmatpush2.bf16.msra.mxu0 %v1655
    %1962 = vmatprep.subr.bf16.mxu0 %v1652
    %1963 = vmatpush2.bf16.msra.mxu0 %v1651
    %1964 = vmatprep.mubr.bf16.mxu0 %v214
    %1965 = vmatmul.mubr.bf16.gmra.mxu0 %v213
    %v1966 = vpop.f32.mrf.mxu0
    %v1967 = vadd.f32 %v1926, %v1966
    %v1968 = vpop.f32.mrf.mxu0
    %v1969 = vadd.f32 %v1928, %v1968
    %v1970 = vpop.f32.mrf.mxu0
    %v1971 = vpop.f32.mrf.mxu0
    %1972 = vdwg.mxu0
    %v1973 = vpack.c.bf16 %v1885, %v1885
    %v1974 = vpack.c.bf16 %v1887, %v1887
    %v1975 = vpack.c.bf16 %v1967, %v1967
    %v1976 = vpack.c.bf16 %v1969, %v1969
    %v1981 = vunpack.c.l.b16 %v1973
    %v1982 = vunpack.c.l.b16 %v1974
    %v1983 = vunpack.c.l.b16 %v1975
    %v1984 = vunpack.c.l.b16 %v1976
    %v1985 = vpack.c.b16 %v1982, %v1981
    %v1986 = vpack.c.b16 %v1984, %v1983
    %1989 = vst [vmem:[#allocation11] sm:$0xff] %v1985
    %1990 = vst [vmem:[#allocation11 + $0x8] sm:$0xff] %v1986
    %v1991 = vld [vmem:[#allocation8] sm:$0xff]
    %v1992 = vld [vmem:[#allocation8 + $0x8] sm:$0xff]
    %v1993 = vld [vmem:[#allocation8 + $0x10] sm:$0xff]
    %v1994 = vld [vmem:[#allocation8 + $0x18] sm:$0xff]
    %v1995 = vld [vmem:[#allocation8 + $0x20] sm:$0xff]
    %v1996 = vld [vmem:[#allocation8 + $0x28] sm:$0xff]
    %v1997 = vld [vmem:[#allocation8 + $0x30] sm:$0xff]
    %v1998 = vld [vmem:[#allocation8 + $0x38] sm:$0xff]
    %v1999 = vld [vmem:[#allocation8 + $0x40] sm:$0xff]
    %v2000 = vld [vmem:[#allocation8 + $0x48] sm:$0xff]
    %v2001 = vld [vmem:[#allocation8 + $0x50] sm:$0xff]
    %v2002 = vld [vmem:[#allocation8 + $0x58] sm:$0xff]
    %v2003 = vld [vmem:[#allocation8 + $0x60] sm:$0xff]
    %v2004 = vld [vmem:[#allocation8 + $0x68] sm:$0xff]
    %v2005 = vld [vmem:[#allocation8 + $0x70] sm:$0xff]
    %v2006 = vld [vmem:[#allocation8 + $0x78] sm:$0xff]
    %v2007 = vld [vmem:[#allocation8 + $0x80] sm:$0xff]
    %v2008 = vld [vmem:[#allocation8 + $0x88] sm:$0xff]
    %v2009 = vld [vmem:[#allocation8 + $0x90] sm:$0xff]
    %v2010 = vld [vmem:[#allocation8 + $0x98] sm:$0xff]
    %v2011 = vld [vmem:[#allocation8 + $0xa0] sm:$0xff]
    %v2012 = vld [vmem:[#allocation8 + $0xa8] sm:$0xff]
    %v2013 = vld [vmem:[#allocation8 + $0xb0] sm:$0xff]
    %v2014 = vld [vmem:[#allocation8 + $0xb8] sm:$0xff]
    %v2015 = vld [vmem:[#allocation8 + $0xc0] sm:$0xff]
    %v2016 = vld [vmem:[#allocation8 + $0xc8] sm:$0xff]
    %v2017 = vld [vmem:[#allocation8 + $0xd0] sm:$0xff]
    %v2018 = vld [vmem:[#allocation8 + $0xd8] sm:$0xff]
    %v2019 = vld [vmem:[#allocation8 + $0xe0] sm:$0xff]
    %v2020 = vld [vmem:[#allocation8 + $0xe8] sm:$0xff]
    %v2021 = vld [vmem:[#allocation8 + $0xf0] sm:$0xff]
    %v2022 = vld [vmem:[#allocation8 + $0xf8] sm:$0xff]
    %v2023 = vld [vmem:[#allocation8 + $0x100] sm:$0xff]
    %v2024 = vld [vmem:[#allocation8 + $0x108] sm:$0xff]
    %v2025 = vld [vmem:[#allocation8 + $0x110] sm:$0xff]
    %v2026 = vld [vmem:[#allocation8 + $0x118] sm:$0xff]
    %v2027 = vld [vmem:[#allocation8 + $0x120] sm:$0xff]
    %v2028 = vld [vmem:[#allocation8 + $0x128] sm:$0xff]
    %v2029 = vld [vmem:[#allocation8 + $0x130] sm:$0xff]
    %v2030 = vld [vmem:[#allocation8 + $0x138] sm:$0xff]
    %v2031 = vld [vmem:[#allocation8 + $0x140] sm:$0xff]
    %v2032 = vld [vmem:[#allocation8 + $0x148] sm:$0xff]
    %v2033 = vld [vmem:[#allocation8 + $0x150] sm:$0xff]
    %v2034 = vld [vmem:[#allocation8 + $0x158] sm:$0xff]
    %v2035 = vld [vmem:[#allocation8 + $0x160] sm:$0xff]
    %v2036 = vld [vmem:[#allocation8 + $0x168] sm:$0xff]
    %v2037 = vld [vmem:[#allocation8 + $0x170] sm:$0xff]
    %v2038 = vld [vmem:[#allocation8 + $0x178] sm:$0xff]
    %v2039 = vld [vmem:[#allocation8 + $0x180] sm:$0xff]
    %v2040 = vld [vmem:[#allocation8 + $0x188] sm:$0xff]
    %v2041 = vld [vmem:[#allocation8 + $0x190] sm:$0xff]
    %v2042 = vld [vmem:[#allocation8 + $0x198] sm:$0xff]
    %v2043 = vld [vmem:[#allocation8 + $0x1a0] sm:$0xff]
    %v2044 = vld [vmem:[#allocation8 + $0x1a8] sm:$0xff]
    %v2045 = vld [vmem:[#allocation8 + $0x1b0] sm:$0xff]
    %v2046 = vld [vmem:[#allocation8 + $0x1b8] sm:$0xff]
    %v2047 = vld [vmem:[#allocation8 + $0x1c0] sm:$0xff]
    %v2048 = vld [vmem:[#allocation8 + $0x1c8] sm:$0xff]
    %v2049 = vld [vmem:[#allocation8 + $0x1d0] sm:$0xff]
    %v2050 = vld [vmem:[#allocation8 + $0x1d8] sm:$0xff]
    %v2051 = vld [vmem:[#allocation8 + $0x1e0] sm:$0xff]
    %v2052 = vld [vmem:[#allocation8 + $0x1e8] sm:$0xff]
    %v2053 = vld [vmem:[#allocation8 + $0x1f0] sm:$0xff]
    %v2054 = vld [vmem:[#allocation8 + $0x1f8] sm:$0xff]
    %v2055 = vld [vmem:[#allocation8 + $0x200] sm:$0xff]
    %v2056 = vld [vmem:[#allocation8 + $0x208] sm:$0xff]
    %v2057 = vld [vmem:[#allocation8 + $0x210] sm:$0xff]
    %v2058 = vld [vmem:[#allocation8 + $0x218] sm:$0xff]
    %v2059 = vld [vmem:[#allocation8 + $0x220] sm:$0xff]
    %v2060 = vld [vmem:[#allocation8 + $0x228] sm:$0xff]
    %v2061 = vld [vmem:[#allocation8 + $0x230] sm:$0xff]
    %v2062 = vld [vmem:[#allocation8 + $0x238] sm:$0xff]
    %v2063 = vld [vmem:[#allocation8 + $0x240] sm:$0xff]
    %v2064 = vld [vmem:[#allocation8 + $0x248] sm:$0xff]
    %v2065 = vld [vmem:[#allocation8 + $0x250] sm:$0xff]
    %v2066 = vld [vmem:[#allocation8 + $0x258] sm:$0xff]
    %v2067 = vld [vmem:[#allocation8 + $0x260] sm:$0xff]
    %v2068 = vld [vmem:[#allocation8 + $0x268] sm:$0xff]
    %v2069 = vld [vmem:[#allocation8 + $0x270] sm:$0xff]
    %v2070 = vld [vmem:[#allocation8 + $0x278] sm:$0xff]
    %v2071 = vld [vmem:[#allocation8 + $0x280] sm:$0xff]
    %v2072 = vld [vmem:[#allocation8 + $0x288] sm:$0xff]
    %v2073 = vld [vmem:[#allocation8 + $0x290] sm:$0xff]
    %v2074 = vld [vmem:[#allocation8 + $0x298] sm:$0xff]
    %v2075 = vld [vmem:[#allocation8 + $0x2a0] sm:$0xff]
    %v2076 = vld [vmem:[#allocation8 + $0x2a8] sm:$0xff]
    %v2077 = vld [vmem:[#allocation8 + $0x2b0] sm:$0xff]
    %v2078 = vld [vmem:[#allocation8 + $0x2b8] sm:$0xff]
    %v2079 = vld [vmem:[#allocation8 + $0x2c0] sm:$0xff]
    %v2080 = vld [vmem:[#allocation8 + $0x2c8] sm:$0xff]
    %v2081 = vld [vmem:[#allocation8 + $0x2d0] sm:$0xff]
    %v2082 = vld [vmem:[#allocation8 + $0x2d8] sm:$0xff]
    %v2083 = vld [vmem:[#allocation8 + $0x2e0] sm:$0xff]
    %v2084 = vld [vmem:[#allocation8 + $0x2e8] sm:$0xff]
    %v2085 = vld [vmem:[#allocation8 + $0x2f0] sm:$0xff]
    %v2086 = vld [vmem:[#allocation8 + $0x2f8] sm:$0xff]
    %v2087 = vld [vmem:[#allocation8 + $0x300] sm:$0xff]
    %v2088 = vld [vmem:[#allocation8 + $0x308] sm:$0xff]
    %v2089 = vld [vmem:[#allocation8 + $0x310] sm:$0xff]
    %v2090 = vld [vmem:[#allocation8 + $0x318] sm:$0xff]
    %v2091 = vld [vmem:[#allocation8 + $0x320] sm:$0xff]
    %v2092 = vld [vmem:[#allocation8 + $0x328] sm:$0xff]
    %v2093 = vld [vmem:[#allocation8 + $0x330] sm:$0xff]
    %v2094 = vld [vmem:[#allocation8 + $0x338] sm:$0xff]
    %v2095 = vld [vmem:[#allocation8 + $0x340] sm:$0xff]
    %v2096 = vld [vmem:[#allocation8 + $0x348] sm:$0xff]
    %v2097 = vld [vmem:[#allocation8 + $0x350] sm:$0xff]
    %v2098 = vld [vmem:[#allocation8 + $0x358] sm:$0xff]
    %v2099 = vld [vmem:[#allocation8 + $0x360] sm:$0xff]
    %v2100 = vld [vmem:[#allocation8 + $0x368] sm:$0xff]
    %v2101 = vld [vmem:[#allocation8 + $0x370] sm:$0xff]
    %v2102 = vld [vmem:[#allocation8 + $0x378] sm:$0xff]
    %v2103 = vld [vmem:[#allocation8 + $0x380] sm:$0xff]
    %v2104 = vld [vmem:[#allocation8 + $0x388] sm:$0xff]
    %v2105 = vld [vmem:[#allocation8 + $0x390] sm:$0xff]
    %v2106 = vld [vmem:[#allocation8 + $0x398] sm:$0xff]
    %v2107 = vld [vmem:[#allocation8 + $0x3a0] sm:$0xff]
    %v2108 = vld [vmem:[#allocation8 + $0x3a8] sm:$0xff]
    %v2109 = vld [vmem:[#allocation8 + $0x3b0] sm:$0xff]
    %v2110 = vld [vmem:[#allocation8 + $0x3b8] sm:$0xff]
    %v2111 = vld [vmem:[#allocation8 + $0x3c0] sm:$0xff]
    %v2112 = vld [vmem:[#allocation8 + $0x3c8] sm:$0xff]
    %v2113 = vld [vmem:[#allocation8 + $0x3d0] sm:$0xff]
    %v2114 = vld [vmem:[#allocation8 + $0x3d8] sm:$0xff]
    %v2115 = vld [vmem:[#allocation8 + $0x3e0] sm:$0xff]
    %v2116 = vld [vmem:[#allocation8 + $0x3e8] sm:$0xff]
    %v2117 = vld [vmem:[#allocation8 + $0x3f0] sm:$0xff]
    %v2118 = vld [vmem:[#allocation8 + $0x3f8] sm:$0xff]
    %v2247 = vunpack.c.l.b16 %v1991
    %v2248 = vunpack.c.h.b16 %v1991
    %v2249 = vunpack.c.l.b16 %v1992
    %v2250 = vunpack.c.h.b16 %v1992
    %v2251 = vunpack.c.l.b16 %v1993
    %v2252 = vunpack.c.h.b16 %v1993
    %v2253 = vunpack.c.l.b16 %v1994
    %v2254 = vunpack.c.h.b16 %v1994
    %v2255 = vunpack.c.l.b16 %v1995
    %v2256 = vunpack.c.h.b16 %v1995
    %v2257 = vunpack.c.l.b16 %v1996
    %v2258 = vunpack.c.h.b16 %v1996
    %v2259 = vunpack.c.l.b16 %v1997
    %v2260 = vunpack.c.h.b16 %v1997
    %v2261 = vunpack.c.l.b16 %v1998
    %v2262 = vunpack.c.h.b16 %v1998
    %v2263 = vunpack.c.l.b16 %v1999
    %v2264 = vunpack.c.h.b16 %v1999
    %v2265 = vunpack.c.l.b16 %v2000
    %v2266 = vunpack.c.h.b16 %v2000
    %v2267 = vunpack.c.l.b16 %v2001
    %v2268 = vunpack.c.h.b16 %v2001
    %v2269 = vunpack.c.l.b16 %v2002
    %v2270 = vunpack.c.h.b16 %v2002
    %v2271 = vunpack.c.l.b16 %v2003
    %v2272 = vunpack.c.h.b16 %v2003
    %v2273 = vunpack.c.l.b16 %v2004
    %v2274 = vunpack.c.h.b16 %v2004
    %v2275 = vunpack.c.l.b16 %v2005
    %v2276 = vunpack.c.h.b16 %v2005
    %v2277 = vunpack.c.l.b16 %v2006
    %v2278 = vunpack.c.h.b16 %v2006
    %v2279 = vunpack.c.l.b16 %v2007
    %v2280 = vunpack.c.h.b16 %v2007
    %v2281 = vunpack.c.l.b16 %v2008
    %v2282 = vunpack.c.h.b16 %v2008
    %v2283 = vunpack.c.l.b16 %v2009
    %v2284 = vunpack.c.h.b16 %v2009
    %v2285 = vunpack.c.l.b16 %v2010
    %v2286 = vunpack.c.h.b16 %v2010
    %v2287 = vunpack.c.l.b16 %v2011
    %v2288 = vunpack.c.h.b16 %v2011
    %v2289 = vunpack.c.l.b16 %v2012
    %v2290 = vunpack.c.h.b16 %v2012
    %v2291 = vunpack.c.l.b16 %v2013
    %v2292 = vunpack.c.h.b16 %v2013
    %v2293 = vunpack.c.l.b16 %v2014
    %v2294 = vunpack.c.h.b16 %v2014
    %v2295 = vunpack.c.l.b16 %v2015
    %v2296 = vunpack.c.h.b16 %v2015
    %v2297 = vunpack.c.l.b16 %v2016
    %v2298 = vunpack.c.h.b16 %v2016
    %v2299 = vunpack.c.l.b16 %v2017
    %v2300 = vunpack.c.h.b16 %v2017
    %v2301 = vunpack.c.l.b16 %v2018
    %v2302 = vunpack.c.h.b16 %v2018
    %v2303 = vunpack.c.l.b16 %v2019
    %v2304 = vunpack.c.h.b16 %v2019
    %v2305 = vunpack.c.l.b16 %v2020
    %v2306 = vunpack.c.h.b16 %v2020
    %v2307 = vunpack.c.l.b16 %v2021
    %v2308 = vunpack.c.h.b16 %v2021
    %v2309 = vunpack.c.l.b16 %v2022
    %v2310 = vunpack.c.h.b16 %v2022
    %v2311 = vunpack.c.l.b16 %v2023
    %v2312 = vunpack.c.h.b16 %v2023
    %v2313 = vunpack.c.l.b16 %v2024
    %v2314 = vunpack.c.h.b16 %v2024
    %v2315 = vunpack.c.l.b16 %v2025
    %v2316 = vunpack.c.h.b16 %v2025
    %v2317 = vunpack.c.l.b16 %v2026
    %v2318 = vunpack.c.h.b16 %v2026
    %v2319 = vunpack.c.l.b16 %v2027
    %v2320 = vunpack.c.h.b16 %v2027
    %v2321 = vunpack.c.l.b16 %v2028
    %v2322 = vunpack.c.h.b16 %v2028
    %v2323 = vunpack.c.l.b16 %v2029
    %v2324 = vunpack.c.h.b16 %v2029
    %v2325 = vunpack.c.l.b16 %v2030
    %v2326 = vunpack.c.h.b16 %v2030
    %v2327 = vunpack.c.l.b16 %v2031
    %v2328 = vunpack.c.h.b16 %v2031
    %v2329 = vunpack.c.l.b16 %v2032
    %v2330 = vunpack.c.h.b16 %v2032
    %v2331 = vunpack.c.l.b16 %v2033
    %v2332 = vunpack.c.h.b16 %v2033
    %v2333 = vunpack.c.l.b16 %v2034
    %v2334 = vunpack.c.h.b16 %v2034
    %v2335 = vunpack.c.l.b16 %v2035
    %v2336 = vunpack.c.h.b16 %v2035
    %v2337 = vunpack.c.l.b16 %v2036
    %v2338 = vunpack.c.h.b16 %v2036
    %v2339 = vunpack.c.l.b16 %v2037
    %v2340 = vunpack.c.h.b16 %v2037
    %v2341 = vunpack.c.l.b16 %v2038
    %v2342 = vunpack.c.h.b16 %v2038
    %v2343 = vunpack.c.l.b16 %v2039
    %v2344 = vunpack.c.h.b16 %v2039
    %v2345 = vunpack.c.l.b16 %v2040
    %v2346 = vunpack.c.h.b16 %v2040
    %v2347 = vunpack.c.l.b16 %v2041
    %v2348 = vunpack.c.h.b16 %v2041
    %v2349 = vunpack.c.l.b16 %v2042
    %v2350 = vunpack.c.h.b16 %v2042
    %v2351 = vunpack.c.l.b16 %v2043
    %v2352 = vunpack.c.h.b16 %v2043
    %v2353 = vunpack.c.l.b16 %v2044
    %v2354 = vunpack.c.h.b16 %v2044
    %v2355 = vunpack.c.l.b16 %v2045
    %v2356 = vunpack.c.h.b16 %v2045
    %v2357 = vunpack.c.l.b16 %v2046
    %v2358 = vunpack.c.h.b16 %v2046
    %v2359 = vunpack.c.l.b16 %v2047
    %v2360 = vunpack.c.h.b16 %v2047
    %v2361 = vunpack.c.l.b16 %v2048
    %v2362 = vunpack.c.h.b16 %v2048
    %v2363 = vunpack.c.l.b16 %v2049
    %v2364 = vunpack.c.h.b16 %v2049
    %v2365 = vunpack.c.l.b16 %v2050
    %v2366 = vunpack.c.h.b16 %v2050
    %v2367 = vunpack.c.l.b16 %v2051
    %v2368 = vunpack.c.h.b16 %v2051
    %v2369 = vunpack.c.l.b16 %v2052
    %v2370 = vunpack.c.h.b16 %v2052
    %v2371 = vunpack.c.l.b16 %v2053
    %v2372 = vunpack.c.h.b16 %v2053
    %v2373 = vunpack.c.l.b16 %v2054
    %v2374 = vunpack.c.h.b16 %v2054
    %v2375 = vunpack.c.l.b16 %v2055
    %v2376 = vunpack.c.h.b16 %v2055
    %v2377 = vunpack.c.l.b16 %v2056
    %v2378 = vunpack.c.h.b16 %v2056
    %v2379 = vunpack.c.l.b16 %v2057
    %v2380 = vunpack.c.h.b16 %v2057
    %v2381 = vunpack.c.l.b16 %v2058
    %v2382 = vunpack.c.h.b16 %v2058
    %v2383 = vunpack.c.l.b16 %v2059
    %v2384 = vunpack.c.h.b16 %v2059
    %v2385 = vunpack.c.l.b16 %v2060
    %v2386 = vunpack.c.h.b16 %v2060
    %v2387 = vunpack.c.l.b16 %v2061
    %v2388 = vunpack.c.h.b16 %v2061
    %v2389 = vunpack.c.l.b16 %v2062
    %v2390 = vunpack.c.h.b16 %v2062
    %v2391 = vunpack.c.l.b16 %v2063
    %v2392 = vunpack.c.h.b16 %v2063
    %v2393 = vunpack.c.l.b16 %v2064
    %v2394 = vunpack.c.h.b16 %v2064
    %v2395 = vunpack.c.l.b16 %v2065
    %v2396 = vunpack.c.h.b16 %v2065
    %v2397 = vunpack.c.l.b16 %v2066
    %v2398 = vunpack.c.h.b16 %v2066
    %v2399 = vunpack.c.l.b16 %v2067
    %v2400 = vunpack.c.h.b16 %v2067
    %v2401 = vunpack.c.l.b16 %v2068
    %v2402 = vunpack.c.h.b16 %v2068
    %v2403 = vunpack.c.l.b16 %v2069
    %v2404 = vunpack.c.h.b16 %v2069
    %v2405 = vunpack.c.l.b16 %v2070
    %v2406 = vunpack.c.h.b16 %v2070
    %v2407 = vunpack.c.l.b16 %v2071
    %v2408 = vunpack.c.h.b16 %v2071
    %v2409 = vunpack.c.l.b16 %v2072
    %v2410 = vunpack.c.h.b16 %v2072
    %v2411 = vunpack.c.l.b16 %v2073
    %v2412 = vunpack.c.h.b16 %v2073
    %v2413 = vunpack.c.l.b16 %v2074
    %v2414 = vunpack.c.h.b16 %v2074
    %v2415 = vunpack.c.l.b16 %v2075
    %v2416 = vunpack.c.h.b16 %v2075
    %v2417 = vunpack.c.l.b16 %v2076
    %v2418 = vunpack.c.h.b16 %v2076
    %v2419 = vunpack.c.l.b16 %v2077
    %v2420 = vunpack.c.h.b16 %v2077
    %v2421 = vunpack.c.l.b16 %v2078
    %v2422 = vunpack.c.h.b16 %v2078
    %v2423 = vunpack.c.l.b16 %v2079
    %v2424 = vunpack.c.h.b16 %v2079
    %v2425 = vunpack.c.l.b16 %v2080
    %v2426 = vunpack.c.h.b16 %v2080
    %v2427 = vunpack.c.l.b16 %v2081
    %v2428 = vunpack.c.h.b16 %v2081
    %v2429 = vunpack.c.l.b16 %v2082
    %v2430 = vunpack.c.h.b16 %v2082
    %v2431 = vunpack.c.l.b16 %v2083
    %v2432 = vunpack.c.h.b16 %v2083
    %v2433 = vunpack.c.l.b16 %v2084
    %v2434 = vunpack.c.h.b16 %v2084
    %v2435 = vunpack.c.l.b16 %v2085
    %v2436 = vunpack.c.h.b16 %v2085
    %v2437 = vunpack.c.l.b16 %v2086
    %v2438 = vunpack.c.h.b16 %v2086
    %v2439 = vunpack.c.l.b16 %v2087
    %v2440 = vunpack.c.h.b16 %v2087
    %v2441 = vunpack.c.l.b16 %v2088
    %v2442 = vunpack.c.h.b16 %v2088
    %v2443 = vunpack.c.l.b16 %v2089
    %v2444 = vunpack.c.h.b16 %v2089
    %v2445 = vunpack.c.l.b16 %v2090
    %v2446 = vunpack.c.h.b16 %v2090
    %v2447 = vunpack.c.l.b16 %v2091
    %v2448 = vunpack.c.h.b16 %v2091
    %v2449 = vunpack.c.l.b16 %v2092
    %v2450 = vunpack.c.h.b16 %v2092
    %v2451 = vunpack.c.l.b16 %v2093
    %v2452 = vunpack.c.h.b16 %v2093
    %v2453 = vunpack.c.l.b16 %v2094
    %v2454 = vunpack.c.h.b16 %v2094
    %v2455 = vunpack.c.l.b16 %v2095
    %v2456 = vunpack.c.h.b16 %v2095
    %v2457 = vunpack.c.l.b16 %v2096
    %v2458 = vunpack.c.h.b16 %v2096
    %v2459 = vunpack.c.l.b16 %v2097
    %v2460 = vunpack.c.h.b16 %v2097
    %v2461 = vunpack.c.l.b16 %v2098
    %v2462 = vunpack.c.h.b16 %v2098
    %v2463 = vunpack.c.l.b16 %v2099
    %v2464 = vunpack.c.h.b16 %v2099
    %v2465 = vunpack.c.l.b16 %v2100
    %v2466 = vunpack.c.h.b16 %v2100
    %v2467 = vunpack.c.l.b16 %v2101
    %v2468 = vunpack.c.h.b16 %v2101
    %v2469 = vunpack.c.l.b16 %v2102
    %v2470 = vunpack.c.h.b16 %v2102
    %v2471 = vunpack.c.l.b16 %v2103
    %v2472 = vunpack.c.h.b16 %v2103
    %v2473 = vunpack.c.l.b16 %v2104
    %v2474 = vunpack.c.h.b16 %v2104
    %v2475 = vunpack.c.l.b16 %v2105
    %v2476 = vunpack.c.h.b16 %v2105
    %v2477 = vunpack.c.l.b16 %v2106
    %v2478 = vunpack.c.h.b16 %v2106
    %v2479 = vunpack.c.l.b16 %v2107
    %v2480 = vunpack.c.h.b16 %v2107
    %v2481 = vunpack.c.l.b16 %v2108
    %v2482 = vunpack.c.h.b16 %v2108
    %v2483 = vunpack.c.l.b16 %v2109
    %v2484 = vunpack.c.h.b16 %v2109
    %v2485 = vunpack.c.l.b16 %v2110
    %v2486 = vunpack.c.h.b16 %v2110
    %v2487 = vunpack.c.l.b16 %v2111
    %v2488 = vunpack.c.h.b16 %v2111
    %v2489 = vunpack.c.l.b16 %v2112
    %v2490 = vunpack.c.h.b16 %v2112
    %v2491 = vunpack.c.l.b16 %v2113
    %v2492 = vunpack.c.h.b16 %v2113
    %v2493 = vunpack.c.l.b16 %v2114
    %v2494 = vunpack.c.h.b16 %v2114
    %v2495 = vunpack.c.l.b16 %v2115
    %v2496 = vunpack.c.h.b16 %v2115
    %v2497 = vunpack.c.l.b16 %v2116
    %v2498 = vunpack.c.h.b16 %v2116
    %v2499 = vunpack.c.l.b16 %v2117
    %v2500 = vunpack.c.h.b16 %v2117
    %v2501 = vunpack.c.l.b16 %v2118
    %v2502 = vunpack.c.h.b16 %v2118
    %v2503 = vpack.c.b16 %v2251, %v2247
    %v2504 = vpack.c.b16 %v2252, %v2248
    %v2505 = vpack.c.b16 %v2253, %v2249
    %v2506 = vpack.c.b16 %v2254, %v2250
    %v2507 = vpack.c.b16 %v2259, %v2255
    %v2508 = vpack.c.b16 %v2260, %v2256
    %v2509 = vpack.c.b16 %v2261, %v2257
    %v2510 = vpack.c.b16 %v2262, %v2258
    %v2511 = vpack.c.b16 %v2267, %v2263
    %v2512 = vpack.c.b16 %v2268, %v2264
    %v2513 = vpack.c.b16 %v2269, %v2265
    %v2514 = vpack.c.b16 %v2270, %v2266
    %v2515 = vpack.c.b16 %v2275, %v2271
    %v2516 = vpack.c.b16 %v2276, %v2272
    %v2517 = vpack.c.b16 %v2277, %v2273
    %v2518 = vpack.c.b16 %v2278, %v2274
    %v2519 = vpack.c.b16 %v2283, %v2279
    %v2520 = vpack.c.b16 %v2284, %v2280
    %v2521 = vpack.c.b16 %v2285, %v2281
    %v2522 = vpack.c.b16 %v2286, %v2282
    %v2523 = vpack.c.b16 %v2291, %v2287
    %v2524 = vpack.c.b16 %v2292, %v2288
    %v2525 = vpack.c.b16 %v2293, %v2289
    %v2526 = vpack.c.b16 %v2294, %v2290
    %v2527 = vpack.c.b16 %v2299, %v2295
    %v2528 = vpack.c.b16 %v2300, %v2296
    %v2529 = vpack.c.b16 %v2301, %v2297
    %v2530 = vpack.c.b16 %v2302, %v2298
    %v2531 = vpack.c.b16 %v2307, %v2303
    %v2532 = vpack.c.b16 %v2308, %v2304
    %v2533 = vpack.c.b16 %v2309, %v2305
    %v2534 = vpack.c.b16 %v2310, %v2306
    %v2535 = vpack.c.b16 %v2315, %v2311
    %v2536 = vpack.c.b16 %v2316, %v2312
    %v2537 = vpack.c.b16 %v2317, %v2313
    %v2538 = vpack.c.b16 %v2318, %v2314
    %v2539 = vpack.c.b16 %v2323, %v2319
    %v2540 = vpack.c.b16 %v2324, %v2320
    %v2541 = vpack.c.b16 %v2325, %v2321
    %v2542 = vpack.c.b16 %v2326, %v2322
    %v2543 = vpack.c.b16 %v2331, %v2327
    %v2544 = vpack.c.b16 %v2332, %v2328
    %v2545 = vpack.c.b16 %v2333, %v2329
    %v2546 = vpack.c.b16 %v2334, %v2330
    %v2547 = vpack.c.b16 %v2339, %v2335
    %v2548 = vpack.c.b16 %v2340, %v2336
    %v2549 = vpack.c.b16 %v2341, %v2337
    %v2550 = vpack.c.b16 %v2342, %v2338
    %v2551 = vpack.c.b16 %v2347, %v2343
    %v2552 = vpack.c.b16 %v2348, %v2344
    %v2553 = vpack.c.b16 %v2349, %v2345
    %v2554 = vpack.c.b16 %v2350, %v2346
    %v2555 = vpack.c.b16 %v2355, %v2351
    %v2556 = vpack.c.b16 %v2356, %v2352
    %v2557 = vpack.c.b16 %v2357, %v2353
    %v2558 = vpack.c.b16 %v2358, %v2354
    %v2559 = vpack.c.b16 %v2363, %v2359
    %v2560 = vpack.c.b16 %v2364, %v2360
    %v2561 = vpack.c.b16 %v2365, %v2361
    %v2562 = vpack.c.b16 %v2366, %v2362
    %v2563 = vpack.c.b16 %v2371, %v2367
    %v2564 = vpack.c.b16 %v2372, %v2368
    %v2565 = vpack.c.b16 %v2373, %v2369
    %v2566 = vpack.c.b16 %v2374, %v2370
    %v2567 = vpack.c.b16 %v2379, %v2375
    %v2568 = vpack.c.b16 %v2380, %v2376
    %v2569 = vpack.c.b16 %v2381, %v2377
    %v2570 = vpack.c.b16 %v2382, %v2378
    %v2571 = vpack.c.b16 %v2387, %v2383
    %v2572 = vpack.c.b16 %v2388, %v2384
    %v2573 = vpack.c.b16 %v2389, %v2385
    %v2574 = vpack.c.b16 %v2390, %v2386
    %v2575 = vpack.c.b16 %v2395, %v2391
    %v2576 = vpack.c.b16 %v2396, %v2392
    %v2577 = vpack.c.b16 %v2397, %v2393
    %v2578 = vpack.c.b16 %v2398, %v2394
    %v2579 = vpack.c.b16 %v2403, %v2399
    %v2580 = vpack.c.b16 %v2404, %v2400
    %v2581 = vpack.c.b16 %v2405, %v2401
    %v2582 = vpack.c.b16 %v2406, %v2402
    %v2583 = vpack.c.b16 %v2411, %v2407
    %v2584 = vpack.c.b16 %v2412, %v2408
    %v2585 = vpack.c.b16 %v2413, %v2409
    %v2586 = vpack.c.b16 %v2414, %v2410
    %v2587 = vpack.c.b16 %v2419, %v2415
    %v2588 = vpack.c.b16 %v2420, %v2416
    %v2589 = vpack.c.b16 %v2421, %v2417
    %v2590 = vpack.c.b16 %v2422, %v2418
    %v2591 = vpack.c.b16 %v2427, %v2423
    %v2592 = vpack.c.b16 %v2428, %v2424
    %v2593 = vpack.c.b16 %v2429, %v2425
    %v2594 = vpack.c.b16 %v2430, %v2426
    %v2595 = vpack.c.b16 %v2435, %v2431
    %v2596 = vpack.c.b16 %v2436, %v2432
    %v2597 = vpack.c.b16 %v2437, %v2433
    %v2598 = vpack.c.b16 %v2438, %v2434
    %v2599 = vpack.c.b16 %v2443, %v2439
    %v2600 = vpack.c.b16 %v2444, %v2440
    %v2601 = vpack.c.b16 %v2445, %v2441
    %v2602 = vpack.c.b16 %v2446, %v2442
    %v2603 = vpack.c.b16 %v2451, %v2447
    %v2604 = vpack.c.b16 %v2452, %v2448
    %v2605 = vpack.c.b16 %v2453, %v2449
    %v2606 = vpack.c.b16 %v2454, %v2450
    %v2607 = vpack.c.b16 %v2459, %v2455
    %v2608 = vpack.c.b16 %v2460, %v2456
    %v2609 = vpack.c.b16 %v2461, %v2457
    %v2610 = vpack.c.b16 %v2462, %v2458
    %v2611 = vpack.c.b16 %v2467, %v2463
    %v2612 = vpack.c.b16 %v2468, %v2464
    %v2613 = vpack.c.b16 %v2469, %v2465
    %v2614 = vpack.c.b16 %v2470, %v2466
    %v2615 = vpack.c.b16 %v2475, %v2471
    %v2616 = vpack.c.b16 %v2476, %v2472
    %v2617 = vpack.c.b16 %v2477, %v2473
    %v2618 = vpack.c.b16 %v2478, %v2474
    %v2619 = vpack.c.b16 %v2483, %v2479
    %v2620 = vpack.c.b16 %v2484, %v2480
    %v2621 = vpack.c.b16 %v2485, %v2481
    %v2622 = vpack.c.b16 %v2486, %v2482
    %v2623 = vpack.c.b16 %v2491, %v2487
    %v2624 = vpack.c.b16 %v2492, %v2488
    %v2625 = vpack.c.b16 %v2493, %v2489
    %v2626 = vpack.c.b16 %v2494, %v2490
    %v2627 = vpack.c.b16 %v2499, %v2495
    %v2628 = vpack.c.b16 %v2500, %v2496
    %v2629 = vpack.c.b16 %v2501, %v2497
    %v2630 = vpack.c.b16 %v2502, %v2498
    %2759 = vmatprep.subr.bf16.mxu0 %v2532
    %2760 = vmatpush1.bf16.msra.mxu0 %v2531
    %2761 = vmatprep.subr.bf16.mxu0 %v2528
    %2762 = vmatpush1.bf16.msra.mxu0 %v2527
    %2763 = vmatprep.subr.bf16.mxu0 %v2524
    %2764 = vmatpush1.bf16.msra.mxu0 %v2523
    %2765 = vmatprep.subr.bf16.mxu0 %v2520
    %2766 = vmatpush1.bf16.msra.mxu0 %v2519
    %2767 = vmatprep.subr.bf16.mxu0 %v2516
    %2768 = vmatpush1.bf16.msra.mxu0 %v2515
    %2769 = vmatprep.subr.bf16.mxu0 %v2512
    %2770 = vmatpush1.bf16.msra.mxu0 %v2511
    %2771 = vmatprep.subr.bf16.mxu0 %v2508
    %2772 = vmatpush1.bf16.msra.mxu0 %v2507
    %2773 = vmatprep.subr.bf16.mxu0 %v2504
    %2774 = vmatpush1.bf16.msra.mxu0 %v2503
    %2775 = vmatprep.subr.bf16.mxu0 %v2564
    %2776 = vmatpush2.bf16.msra.mxu0 %v2563
    %2777 = vmatprep.subr.bf16.mxu0 %v2560
    %2778 = vmatpush2.bf16.msra.mxu0 %v2559
    %2779 = vmatprep.subr.bf16.mxu0 %v2556
    %2780 = vmatpush2.bf16.msra.mxu0 %v2555
    %2781 = vmatprep.subr.bf16.mxu0 %v2552
    %2782 = vmatpush2.bf16.msra.mxu0 %v2551
    %2783 = vmatprep.subr.bf16.mxu0 %v2548
    %2784 = vmatpush2.bf16.msra.mxu0 %v2547
    %2785 = vmatprep.subr.bf16.mxu0 %v2544
    %2786 = vmatpush2.bf16.msra.mxu0 %v2543
    %2787 = vmatprep.subr.bf16.mxu0 %v2540
    %2788 = vmatpush2.bf16.msra.mxu0 %v2539
    %2789 = vmatprep.subr.bf16.mxu0 %v2536
    %2790 = vmatpush2.bf16.msra.mxu0 %v2535
    %2791 = vmatprep.mubr.bf16.mxu0 %v212
    %2792 = vmatmul.mubr.bf16.gmra.mxu0 %v211
    %v2793 = vpop.f32.mrf.mxu0
    %v2794 = vadd.f32 0.0, %v2793
    %v2795 = vpop.f32.mrf.mxu0
    %v2796 = vadd.f32 0.0, %v2795
    %v2797 = vpop.f32.mrf.mxu0
    %v2798 = vpop.f32.mrf.mxu0
    %2799 = vdwg.mxu0
    %2800 = vmatprep.subr.bf16.mxu0 %v2596
    %2801 = vmatpush1.bf16.msra.mxu0 %v2595
    %2802 = vmatprep.subr.bf16.mxu0 %v2592
    %2803 = vmatpush1.bf16.msra.mxu0 %v2591
    %2804 = vmatprep.subr.bf16.mxu0 %v2588
    %2805 = vmatpush1.bf16.msra.mxu0 %v2587
    %2806 = vmatprep.subr.bf16.mxu0 %v2584
    %2807 = vmatpush1.bf16.msra.mxu0 %v2583
    %2808 = vmatprep.subr.bf16.mxu0 %v2580
    %2809 = vmatpush1.bf16.msra.mxu0 %v2579
    %2810 = vmatprep.subr.bf16.mxu0 %v2576
    %2811 = vmatpush1.bf16.msra.mxu0 %v2575
    %2812 = vmatprep.subr.bf16.mxu0 %v2572
    %2813 = vmatpush1.bf16.msra.mxu0 %v2571
    %2814 = vmatprep.subr.bf16.mxu0 %v2568
    %2815 = vmatpush1.bf16.msra.mxu0 %v2567
    %2816 = vmatprep.subr.bf16.mxu0 %v2628
    %2817 = vmatpush2.bf16.msra.mxu0 %v2627
    %2818 = vmatprep.subr.bf16.mxu0 %v2624
    %2819 = vmatpush2.bf16.msra.mxu0 %v2623
    %2820 = vmatprep.subr.bf16.mxu0 %v2620
    %2821 = vmatpush2.bf16.msra.mxu0 %v2619
    %2822 = vmatprep.subr.bf16.mxu0 %v2616
    %2823 = vmatpush2.bf16.msra.mxu0 %v2615
    %2824 = vmatprep.subr.bf16.mxu0 %v2612
    %2825 = vmatpush2.bf16.msra.mxu0 %v2611
    %2826 = vmatprep.subr.bf16.mxu0 %v2608
    %2827 = vmatpush2.bf16.msra.mxu0 %v2607
    %2828 = vmatprep.subr.bf16.mxu0 %v2604
    %2829 = vmatpush2.bf16.msra.mxu0 %v2603
    %2830 = vmatprep.subr.bf16.mxu0 %v2600
    %2831 = vmatpush2.bf16.msra.mxu0 %v2599
    %2832 = vmatprep.mubr.bf16.mxu0 %v214
    %2833 = vmatmul.mubr.bf16.gmra.mxu0 %v213
    %v2834 = vpop.f32.mrf.mxu0
    %v2835 = vadd.f32 %v2794, %v2834
    %v2836 = vpop.f32.mrf.mxu0
    %v2837 = vadd.f32 %v2796, %v2836
    %v2838 = vpop.f32.mrf.mxu0
    %v2839 = vpop.f32.mrf.mxu0
    %2840 = vdwg.mxu0
    %2841 = vmatprep.subr.bf16.mxu0 %v2534
    %2842 = vmatpush1.bf16.msra.mxu0 %v2533
    %2843 = vmatprep.subr.bf16.mxu0 %v2530
    %2844 = vmatpush1.bf16.msra.mxu0 %v2529
    %2845 = vmatprep.subr.bf16.mxu0 %v2526
    %2846 = vmatpush1.bf16.msra.mxu0 %v2525
    %2847 = vmatprep.subr.bf16.mxu0 %v2522
    %2848 = vmatpush1.bf16.msra.mxu0 %v2521
    %2849 = vmatprep.subr.bf16.mxu0 %v2518
    %2850 = vmatpush1.bf16.msra.mxu0 %v2517
    %2851 = vmatprep.subr.bf16.mxu0 %v2514
    %2852 = vmatpush1.bf16.msra.mxu0 %v2513
    %2853 = vmatprep.subr.bf16.mxu0 %v2510
    %2854 = vmatpush1.bf16.msra.mxu0 %v2509
    %2855 = vmatprep.subr.bf16.mxu0 %v2506
    %2856 = vmatpush1.bf16.msra.mxu0 %v2505
    %2857 = vmatprep.subr.bf16.mxu0 %v2566
    %2858 = vmatpush2.bf16.msra.mxu0 %v2565
    %2859 = vmatprep.subr.bf16.mxu0 %v2562
    %2860 = vmatpush2.bf16.msra.mxu0 %v2561
    %2861 = vmatprep.subr.bf16.mxu0 %v2558
    %2862 = vmatpush2.bf16.msra.mxu0 %v2557
    %2863 = vmatprep.subr.bf16.mxu0 %v2554
    %2864 = vmatpush2.bf16.msra.mxu0 %v2553
    %2865 = vmatprep.subr.bf16.mxu0 %v2550
    %2866 = vmatpush2.bf16.msra.mxu0 %v2549
    %2867 = vmatprep.subr.bf16.mxu0 %v2546
    %2868 = vmatpush2.bf16.msra.mxu0 %v2545
    %2869 = vmatprep.subr.bf16.mxu0 %v2542
    %2870 = vmatpush2.bf16.msra.mxu0 %v2541
    %2871 = vmatprep.subr.bf16.mxu0 %v2538
    %2872 = vmatpush2.bf16.msra.mxu0 %v2537
    %2873 = vmatprep.mubr.bf16.mxu0 %v212
    %2874 = vmatmul.mubr.bf16.gmra.mxu0 %v211
    %v2875 = vpop.f32.mrf.mxu0
    %v2876 = vadd.f32 0.0, %v2875
    %v2877 = vpop.f32.mrf.mxu0
    %v2878 = vadd.f32 0.0, %v2877
    %v2879 = vpop.f32.mrf.mxu0
    %v2880 = vpop.f32.mrf.mxu0
    %2881 = vdwg.mxu0
    %2882 = vmatprep.subr.bf16.mxu0 %v2598
    %2883 = vmatpush1.bf16.msra.mxu0 %v2597
    %2884 = vmatprep.subr.bf16.mxu0 %v2594
    %2885 = vmatpush1.bf16.msra.mxu0 %v2593
    %2886 = vmatprep.subr.bf16.mxu0 %v2590
    %2887 = vmatpush1.bf16.msra.mxu0 %v2589
    %2888 = vmatprep.subr.bf16.mxu0 %v2586
    %2889 = vmatpush1.bf16.msra.mxu0 %v2585
    %2890 = vmatprep.subr.bf16.mxu0 %v2582
    %2891 = vmatpush1.bf16.msra.mxu0 %v2581
    %2892 = vmatprep.subr.bf16.mxu0 %v2578
    %2893 = vmatpush1.bf16.msra.mxu0 %v2577
    %2894 = vmatprep.subr.bf16.mxu0 %v2574
    %2895 = vmatpush1.bf16.msra.mxu0 %v2573
    %2896 = vmatprep.subr.bf16.mxu0 %v2570
    %2897 = vmatpush1.bf16.msra.mxu0 %v2569
    %2898 = vmatprep.subr.bf16.mxu0 %v2630
    %2899 = vmatpush2.bf16.msra.mxu0 %v2629
    %2900 = vmatprep.subr.bf16.mxu0 %v2626
    %2901 = vmatpush2.bf16.msra.mxu0 %v2625
    %2902 = vmatprep.subr.bf16.mxu0 %v2622
    %2903 = vmatpush2.bf16.msra.mxu0 %v2621
    %2904 = vmatprep.subr.bf16.mxu0 %v2618
    %2905 = vmatpush2.bf16.msra.mxu0 %v2617
    %2906 = vmatprep.subr.bf16.mxu0 %v2614
    %2907 = vmatpush2.bf16.msra.mxu0 %v2613
    %2908 = vmatprep.subr.bf16.mxu0 %v2610
    %2909 = vmatpush2.bf16.msra.mxu0 %v2609
    %2910 = vmatprep.subr.bf16.mxu0 %v2606
    %2911 = vmatpush2.bf16.msra.mxu0 %v2605
    %2912 = vmatprep.subr.bf16.mxu0 %v2602
    %2913 = vmatpush2.bf16.msra.mxu0 %v2601
    %2914 = vmatprep.mubr.bf16.mxu0 %v214
    %2915 = vmatmul.mubr.bf16.gmra.mxu0 %v213
    %v2916 = vpop.f32.mrf.mxu0
    %v2917 = vadd.f32 %v2876, %v2916
    %v2918 = vpop.f32.mrf.mxu0
    %v2919 = vadd.f32 %v2878, %v2918
    %v2920 = vpop.f32.mrf.mxu0
    %v2921 = vpop.f32.mrf.mxu0
    %2922 = vdwg.mxu0
    %v2923 = vpack.c.bf16 %v2835, %v2835
    %v2924 = vpack.c.bf16 %v2837, %v2837
    %v2925 = vpack.c.bf16 %v2917, %v2917
    %v2926 = vpack.c.bf16 %v2919, %v2919
    %v2931 = vunpack.c.l.b16 %v2923
    %v2932 = vunpack.c.l.b16 %v2924
    %v2933 = vunpack.c.l.b16 %v2925
    %v2934 = vunpack.c.l.b16 %v2926
    %v2935 = vpack.c.b16 %v2932, %v2931
    %v2936 = vpack.c.b16 %v2934, %v2933
    %2939 = vst [vmem:[#allocation13] sm:$0xff] %v2935
    %2940 = vst [vmem:[#allocation13 + $0x8] sm:$0xff] %v2936
    // Predicated region
    $region34: #{tpu_custom_call.1} parent=1 // pred_check
      _
    $region35: #{tpu_custom_call.1} parent=1 // pred_check_branch
      %2942 = sbr.rel (0) target = $region37
    $region36: #{tpu_custom_call.1} parent=1 // pred_region
      %s2944 = ssub.s32 256, 256
      %2945 = vsyncadd [#allocation4], %s2944
      %s2947 = sshll.u32 [#allocation10], 4
      %s2948 = int_to_ptr.vmem [resolvable:$true] %s2947
      %2950 = dma.vmem_to_hbm [thread:$0]  %s2948, 256, %s4, [#allocation4]
    $region37: #{tpu_custom_call.1} parent=1 // pred_fallthru
      _
    // Predicated region
    $region38: #{tpu_custom_call.1} parent=1 // pred_check
      _
    $region39: #{tpu_custom_call.1} parent=1 // pred_check_branch
      %2952 = sbr.rel (0) target = $region41
    $region40: #{tpu_custom_call.1} parent=1 // pred_region
      %s2954 = ssub.s32 256, 256
      %2955 = vsyncadd [#allocation12], %s2954
      %s2957 = sshll.u32 [#allocation11], 4
      %s2958 = int_to_ptr.vmem [resolvable:$true] %s2957
      %2960 = dma.vmem_to_hbm [thread:$0]  %s2958, 256, %s5, [#allocation12]
    $region41: #{tpu_custom_call.1} parent=1 // pred_fallthru
      _
    // Predicated region
    $region42: #{tpu_custom_call.1} parent=1 // pred_check
      _
    $region43: #{tpu_custom_call.1} parent=1 // pred_check_branch
      %2962 = sbr.rel (0) target = $region45
    $region44: #{tpu_custom_call.1} parent=1 // pred_region
      %s2964 = ssub.s32 256, 256
      %2965 = vsyncadd [#allocation12], %s2964
      %s2967 = sshll.u32 [#allocation13], 4
      %s2968 = int_to_ptr.vmem [resolvable:$true] %s2967
      %2970 = dma.vmem_to_hbm [thread:$0]  %s2968, 256, %s6, [#allocation12]
    $region45: #{tpu_custom_call.1} parent=1 // pred_fallthru
      _
    // Predicated region
    $region46: #{tpu_custom_call.1} parent=1 // pred_check
      _
    $region47: #{tpu_custom_call.1} parent=1 // pred_check_branch
      %2972 = sbr.rel (0) target = $region49
    $region48: #{tpu_custom_call.1} parent=1 // pred_region
      %2973 = dma.done [#allocation4], 256
    $region49: #{tpu_custom_call.1} parent=1 // pred_fallthru
      _
    // Predicated region
    $region50: #{tpu_custom_call.1} parent=1 // pred_check
      _
    $region51: #{tpu_custom_call.1} parent=1 // pred_check_branch
      %2975 = sbr.rel (0) target = $region53
    $region52: #{tpu_custom_call.1} parent=1 // pred_region
      %2976 = dma.done [#allocation12], 256
    $region53: #{tpu_custom_call.1} parent=1 // pred_fallthru
      _
    // Predicated region
    $region54: #{tpu_custom_call.1} parent=1 // pred_check
      _
    $region55: #{tpu_custom_call.1} parent=1 // pred_check_branch
      %2978 = sbr.rel (0) target = $region57
    $region56: #{tpu_custom_call.1} parent=1 // pred_region
      %2979 = dma.done [#allocation12], 256
    $region57: #{tpu_custom_call.1} parent=1 // pred_fallthru
      _
    %2980 = vsyncpa [#allocation3], 1
    %2981 = vsyncpa [#allocation6], 1
    %2982 = vsyncpa [#allocation9], 1
    %2983 = vsyncpa [#allocation4], 1
    %2984 = vsyncpa [#allocation12], 1

</llo_original>
